<compile_context>
chip_gen: v7x
topology: tpu7x:2x2x1
jax: 0.10.0
libtpu: 0.0.40
codegen_flags: <defaults>
</compile_context>

<pallas_src>
import math
import jax
import jax.numpy as jnp
from jax.experimental import pallas as pl
from jax.experimental.pallas import tpu as pltpu


def _conv_size_out(size, k, s):
    return (size - (k - 1) - 1) // s + 1


# --------------------------------------------------------------------------------------
# Fused forward kernel.  All geometry is static (baked in at trace time by the builder).
# --------------------------------------------------------------------------------------
def _make_fused_kernel(N, k2, s2, oh2, ow2, hh1, ww1, k3, oh3, ow3):
    def kernel(p1_ref, w1_ref, b1_ref, w2_ref, b2_ref, w3_ref, b3_ref,
               wf_ref, bf_ref, wva_ref, bva_ref, o_ref, c1_ref, c2_ref):
        f32 = jnp.float32

        # ---- conv1: one dense (oh1*ow1*N, k1*k1*C) x (k1*k1*C, 32) matmul + bias + ReLU.
        # Rows of the host-built patch matrix (and therefore of c1) are in parity-split
        # order (ph, pw, hh, ww, n), so every conv2 tap below is a contiguous row block.
        c1 = jnp.dot(p1_ref[...], w1_ref[...], preferred_element_type=f32) + b1_ref[...]
        c1_ref[...] = jnp.maximum(c1, 0.0)                       # single dense store

        # ---- conv2: in-kernel im2col (contiguous row-block reads only) into a single
        # (oh2*ow2*N, k2*k2*oc1) LHS, then ONE MXU matmul with K = k2*k2*oc1.
        taps = []
        for i in range(k2):
            for j in range(k2):
                plane = (i % s2) * s2 + (j % s2)
                ih, jh = i // s2, j // s2
                rows = []
                for a in range(oh2):
                    rs = (plane * hh1 + ih + a) * (ww1 * N) + jh * N
                    rows.append(c1_ref[rs:rs + ow2 * N, :])      # (ow2*N, oc1), rows (b, n)
                taps.append(rows[0] if oh2 == 1 else jnp.concatenate(rows, axis=0))
        p2 = jnp.concatenate(taps, axis=-1)                      # (oh2*ow2*N, k2*k2*oc1)
        c2 = jnp.dot(p2, w2_ref[...], preferred_element_type=f32) + b2_ref[...]
        c2_ref[...] = jnp.maximum(c2, 0.0)                       # rows (h2, w2, n); dense store

        # ---- conv3: same single-matmul im2col (stride 1 => taps are contiguous row blocks
        # of c2), then fc1 as one (N, oc3) x (oc3, 512) matmul per conv3 position.  fc1's
        # weight was pre-split into per-position slabs, so the PyTorch NCHW flatten is never
        # materialized.
        taps = []
        for i in range(k3):
            for j in range(k3):
                rows = []
                for a in range(oh3):
                    rs = ((a + i) * ow2 + j) * N
                    rows.append(c2_ref[rs:rs + ow3 * N, :])      # (ow3*N, oc2), rows (b, n)
                taps.append(rows[0] if oh3 == 1 else jnp.concatenate(rows, axis=0))
        p3 = jnp.concatenate(taps, axis=-1)                      # (oh3*ow3*N, k3*k3*oc2)
        c3 = jnp.maximum(
            jnp.dot(p3, w3_ref[...], preferred_element_type=f32) + b3_ref[...], 0.0)

        nf = wf_ref.shape[-1]
        accf = jnp.zeros((N, nf), f32)
        for pos in range(oh3 * ow3):                             # 1 position at this geometry
            accf = accf + jnp.dot(c3[pos * N:(pos + 1) * N, :], wf_ref[pos],
                                  preferred_element_type=f32)
        flat1 = jnp.maximum(accf + bf_ref[...], 0.0)

        # ---- dueling head: V and A merged into one (512, 1 + n_actions) matmul.
        va = jnp.dot(flat1, wva_ref[...], preferred_element_type=f32) + bva_ref[...]
        v, adv = va[:, 0:1], va[:, 1:]
        # torch semantics: A.mean() is the GLOBAL mean over the whole (N, n_actions) tensor.
        o_ref[...] = v + adv - jnp.mean(adv)

    return kernel


# --------------------------------------------------------------------------------------
# Host-side glue (XLA): conv1 im2col only, emitting rows in parity-split order.
# --------------------------------------------------------------------------------------
def _im2col_conv1_parity(x_nchw, k, s, s2):
    """(N, C, H, W) -> (oh*ow*N, k*k*C) patch matrix.  Rows ordered (ph, pw, hh, ww, n)
    with h = s2*hh + ph, w = s2*ww + pw; columns ordered (kh, kw, c)."""
    N, C, H, W = x_nchw.shape
    oh, ow = _conv_size_out(H, k, s), _conv_size_out(W, k, s)
    assert oh % s2 == 0 and ow % s2 == 0, (
        "parity-split layout needs conv1 output divisible by conv2 stride "
        f"(got {oh}x{ow}, stride {s2})")
    x = x_nchw.transpose(0, 2, 3, 1)                                      # NHWC
    slabs = [x[:, i:i + s * oh:s, j:j + s * ow:s, :]
             for i in range(k) for j in range(k)]                         # each (N, oh, ow, C)
    p = jnp.concatenate(slabs, axis=-1)                                   # (N, oh, ow, k*k*C)
    p = p.reshape(N, oh // s2, s2, ow // s2, s2, k * k * C)               # (n, hh, ph, ww, pw, K)
    p = p.transpose(2, 4, 1, 3, 0, 5)                                     # (ph, pw, hh, ww, n, K)
    return p.reshape(oh * ow * N, k * k * C)


# --------------------------------------------------------------------------------------
# Parameters: PyTorch-layout init + one-time re-layout into the kernel's layout.
# --------------------------------------------------------------------------------------
def init_qnetwork_params(key, n_actions, input_shape):
    """PyTorch-layout params, PyTorch-default uniform(-1/sqrt(fan_in), 1/sqrt(fan_in))."""
    in_c, H, W = input_shape
    convw = _conv_size_out(_conv_size_out(_conv_size_out(W, 8, 4), 4, 2), 3, 1)
    convh = _conv_size_out(_conv_size_out(_conv_size_out(H, 8, 4), 4, 2), 3, 1)
    cv3_out = convw * convh * 64

    def unif(k_, shape, fan_in):
        bound = 1.0 / math.sqrt(fan_in)
        return jax.random.uniform(k_, shape, jnp.float32, -bound, bound)

    keys = jax.random.split(key, 12)
    return {
        "cv1_w": unif(keys[0], (32, in_c, 8, 8), in_c * 8 * 8),
        "cv1_b": unif(keys[1], (32,), in_c * 8 * 8),
        "cv2_w": unif(keys[2], (64, 32, 4, 4), 32 * 4 * 4),
        "cv2_b": unif(keys[3], (64,), 32 * 4 * 4),
        "cv3_w": unif(keys[4], (64, 64, 3, 3), 64 * 3 * 3),
        "cv3_b": unif(keys[5], (64,), 64 * 3 * 3),
        "fc1_w": unif(keys[6], (512, cv3_out), cv3_out),     # PyTorch Linear: (out, in)
        "fc1_b": unif(keys[7], (512,), cv3_out),
        "V_w":   unif(keys[8], (1, 512), 512),
        "V_b":   unif(keys[9], (1,), 512),
        "A_w":   unif(keys[10], (n_actions, 512), 512),
        "A_b":   unif(keys[11], (n_actions,), 512),
    }


def prepare_qnetwork_params(params, input_shape):
    """One-time re-layout of PyTorch params into the fused kernel's layout (done at init,
    so the forward pass never transposes / reshapes weights)."""
    in_c, H, W = input_shape
    oh3 = _conv_size_out(_conv_size_out(_conv_size_out(H, 8, 4), 4, 2), 3, 1)
    ow3 = _conv_size_out(_conv_size_out(_conv_size_out(W, 8, 4), 4, 2), 3, 1)
    s3 = oh3 * ow3
    oc3 = params["cv3_w"].shape[0]

    def conv_w_mat(w):            # (OC, IC, kh, kw) -> (kh*kw*IC, OC), rows (kh, kw, c)
        oc, ic, kh, kw = w.shape
        return jnp.transpose(w, (2, 3, 1, 0)).reshape(kh * kw * ic, oc)

    return {
        "w1": conv_w_mat(params["cv1_w"]),            # (8*8*in_c, 32)
        "b1": params["cv1_b"].reshape(1, -1),
        "w2": conv_w_mat(params["cv2_w"]),            # (4*4*32, 64) = (512, 64)
        "b2": params["cv2_b"].reshape(1, -1),
        "w3": conv_w_mat(params["cv3_w"]),            # (3*3*64, 64) = (576, 64)
        "b3": params["cv3_b"].reshape(1, -1),
        # fc1: absorb the NCHW flatten -> per-conv3-position (oc3, 512) slabs.
        "wf": jnp.transpose(params["fc1_w"].reshape(512, oc3, s3), (2, 1, 0)),  # (s3, 64, 512)
        "bf": params["fc1_b"].reshape(1, -1),
        # merged dueling head: [V | A]
        "wva": jnp.concatenate([params["V_w"].T, params["A_w"].T], axis=1),     # (512, 1+A)
        "bva": jnp.concatenate([params["V_b"], params["A_b"]]).reshape(1, -1),
    }


# --------------------------------------------------------------------------------------
# Forward pass.
# --------------------------------------------------------------------------------------
@jax.jit
def qnetwork_forward(prepared, state):
    """state: (N, C, H, W) float32 NCHW -> actions (N, n_actions)."""
    N, C, H, W = state.shape
    s2 = 2
    oh1, ow1 = _conv_size_out(H, 8, 4), _conv_size_out(W, 8, 4)
    oh2, ow2 = _conv_size_out(oh1, 4, 2), _conv_size_out(ow1, 4, 2)
    oh3, ow3 = _conv_size_out(oh2, 3, 1), _conv_size_out(ow2, 3, 1)
    n_actions = prepared["wva"].shape[1] - 1
    oc1 = prepared["w1"].shape[1]
    oc2 = prepared["w2"].shape[-1]

    patches1 = _im2col_conv1_parity(state, k=8, s=4, s2=s2)      # (oh1*ow1*N, 8*8*C)

    kernel = _make_fused_kernel(N, 4, s2, oh2, ow2, oh1 // s2, ow1 // s2, 3, oh3, ow3)
    return pl.pallas_call(
        kernel,
        out_shape=jax.ShapeDtypeStruct((N, n_actions), jnp.float32),
        in_specs=[pl.BlockSpec(memory_space=pltpu.MemorySpace.VMEM) for _ in range(11)],
        out_specs=pl.BlockSpec(memory_space=pltpu.MemorySpace.VMEM),
        scratch_shapes=[
            pltpu.VMEM((oh1 * ow1 * N, oc1), jnp.float32),    # conv1 activations (VMEM-resident)
            pltpu.VMEM((oh2 * ow2 * N, oc2), jnp.float32),    # conv2 activations (VMEM-resident)
        ],
    )(patches1, prepared["w1"], prepared["b1"],
      prepared["w2"], prepared["b2"],
      prepared["w3"], prepared["b3"],
      prepared["wf"], prepared["bf"],
      prepared["wva"], prepared["bva"])


# --------------------------------------------------------------------------------------
# Pure-XLA reference (PyTorch semantics) for a correctness check.
# --------------------------------------------------------------------------------------
def qnetwork_reference(params, state):
    hp = jax.lax.Precision.HIGHEST

    def conv(x, w, b, stride):
        y = jax.lax.conv_general_dilated(
            x, w, window_strides=(stride, stride), padding="VALID",
            dimension_numbers=("NCHW", "OIHW", "NCHW"), precision=hp)
        return jax.nn.relu(y + b.reshape(1, -1, 1, 1))

    c1 = conv(state, params["cv1_w"], params["cv1_b"], 4)
    c2 = conv(c1, params["cv2_w"], params["cv2_b"], 2)
    c3 = conv(c2, params["cv3_w"], params["cv3_b"], 1)
    flat = c3.reshape(c3.shape[0], -1)
    flat1 = jax.nn.relu(jnp.dot(flat, params["fc1_w"].T, precision=hp) + params["fc1_b"])
    V = jnp.dot(flat1, params["V_w"].T, precision=hp) + params["V_b"]
    A = jnp.dot(flat1, params["A_w"].T, precision=hp) + params["A_b"]
    return V + A - A.mean()


if __name__ == "__main__":
    key = jax.random.PRNGKey(0)
    k_param, k_x = jax.random.split(key)

    n_actions = 6
    input_shape = (4, 36, 36)        # (C, H, W): 36 -> 8 -> 3 -> 1 through the conv stack
    batch = 2

    torch_params = init_qnetwork_params(k_param, n_actions, input_shape)
    prepared = prepare_qnetwork_params(torch_params, input_shape)
    x = jax.random.normal(k_x, (batch,) + input_shape, dtype=jnp.float32)

    actions = qnetwork_forward(prepared, x)
    actions = jax.block_until_ready(actions)

    assert actions.shape == (batch, n_actions)
    assert actions.dtype == jnp.float32

    ref = qnetwork_reference(torch_params, x)
    max_err = float(jnp.max(jnp.abs(actions - ref)))
    assert max_err < 5e-2, f"mismatch vs reference: {max_err}"

    print("KERNEL_OK")
</pallas_src>

<mosaic_0001>
module attributes {stable_mosaic.version = 11 : i64} {
  func.func @kernel(%arg0: memref<128x256xf32, #tpu.memory_space<vmem>>, %arg1: memref<256x32xf32, #tpu.memory_space<vmem>>, %arg2: memref<1x32xf32, #tpu.memory_space<vmem>>, %arg3: memref<512x64xf32, #tpu.memory_space<vmem>>, %arg4: memref<1x64xf32, #tpu.memory_space<vmem>>, %arg5: memref<576x64xf32, #tpu.memory_space<vmem>>, %arg6: memref<1x64xf32, #tpu.memory_space<vmem>>, %arg7: memref<1x64x512xf32, #tpu.memory_space<vmem>>, %arg8: memref<1x512xf32, #tpu.memory_space<vmem>>, %arg9: memref<512x7xf32, #tpu.memory_space<vmem>>, %arg10: memref<1x7xf32, #tpu.memory_space<vmem>>, %arg11: memref<2x6xf32, #tpu.memory_space<vmem>>, %arg12: memref<128x32xf32, #tpu.memory_space<vmem>>, %arg13: memref<18x64xf32, #tpu.memory_space<vmem>>) attributes {dimension_semantics = [], scalar_prefetch = 0 : i64, scratch_operands = 2 : i64, tpu.core_type = #tpu.core_type<tc>} {
    %c0 = arith.constant 0 : index
    %c0_0 = arith.constant 0 : index
    %0 = vector.load %arg0[%c0, %c0_0] : memref<128x256xf32, #tpu.memory_space<vmem>>, vector<128x256xf32>
    %c0_1 = arith.constant 0 : index
    %c0_2 = arith.constant 0 : index
    %1 = vector.load %arg1[%c0_1, %c0_2] : memref<256x32xf32, #tpu.memory_space<vmem>>, vector<256x32xf32>
    %cst = arith.constant dense<0.000000e+00> : vector<128x32xf32>
    %2 = tpu.matmul %0, %1, %cst {dimension_numbers = #tpu.dot_dimension_numbers<[1], [0], [0], [1], [0, 0, 1, 1], [], []>} : vector<128x256xf32>, vector<256x32xf32>, vector<128x32xf32> -> vector<128x32xf32>
    %c0_3 = arith.constant 0 : index
    %c0_4 = arith.constant 0 : index
    %3 = vector.load %arg2[%c0_3, %c0_4] : memref<1x32xf32, #tpu.memory_space<vmem>>, vector<1x32xf32>
    %4 = vector.broadcast %3 : vector<1x32xf32> to vector<128x32xf32>
    %5 = arith.addf %2, %4 : vector<128x32xf32>
    %cst_5 = arith.constant 0.000000e+00 : f32
    %6 = vector.broadcast %cst_5 : f32 to vector<128x32xf32>
    %7 = arith.maximumf %5, %6 : vector<128x32xf32>
    %c0_6 = arith.constant 0 : index
    %c0_7 = arith.constant 0 : index
    %8 = vector.load %arg12[%c0_6, %c0_7] : memref<128x32xf32, #tpu.memory_space<vmem>>, vector<128x32xf32>
    tpu.vector_store %arg12[%c0_6, %c0_7], %7 {strides = array<i32>} : memref<128x32xf32, #tpu.memory_space<vmem>>, vector<128x32xf32>,
    %c0_8 = arith.constant 0 : index
    %c0_9 = arith.constant 0 : index
    %9 = vector.load %arg12[%c0_8, %c0_9] : memref<128x32xf32, #tpu.memory_space<vmem>>, vector<6x32xf32>
    %c8 = arith.constant 8 : index
    %c0_10 = arith.constant 0 : index
    %10 = vector.load %arg12[%c8, %c0_10] : memref<128x32xf32, #tpu.memory_space<vmem>>, vector<6x32xf32>
    %c16 = arith.constant 16 : index
    %c0_11 = arith.constant 0 : index
    %11 = vector.load %arg12[%c16, %c0_11] : memref<128x32xf32, #tpu.memory_space<vmem>>, vector<6x32xf32>
    %12 = tpu.concatenate %9, %10, %11 in 0 : vector<6x32xf32>, vector<6x32xf32>, vector<6x32xf32> -> vector<18x32xf32>
    %c32 = arith.constant 32 : index
    %c0_12 = arith.constant 0 : index
    %13 = vector.load %arg12[%c32, %c0_12] : memref<128x32xf32, #tpu.memory_space<vmem>>, vector<6x32xf32>
    %c40 = arith.constant 40 : index
    %c0_13 = arith.constant 0 : index
    %14 = vector.load %arg12[%c40, %c0_13] : memref<128x32xf32, #tpu.memory_space<vmem>>, vector<6x32xf32>
    %c48 = arith.constant 48 : index
    %c0_14 = arith.constant 0 : index
    %15 = vector.load %arg12[%c48, %c0_14] : memref<128x32xf32, #tpu.memory_space<vmem>>, vector<6x32xf32>
    %16 = tpu.concatenate %13, %14, %15 in 0 : vector<6x32xf32>, vector<6x32xf32>, vector<6x32xf32> -> vector<18x32xf32>
    %c2 = arith.constant 2 : index
    %c0_15 = arith.constant 0 : index
    %17 = vector.load %arg12[%c2, %c0_15] : memref<128x32xf32, #tpu.memory_space<vmem>>, vector<6x32xf32>
    %c10 = arith.constant 10 : index
    %c0_16 = arith.constant 0 : index
    %18 = vector.load %arg12[%c10, %c0_16] : memref<128x32xf32, #tpu.memory_space<vmem>>, vector<6x32xf32>
    %c18 = arith.constant 18 : index
    %c0_17 = arith.constant 0 : index
    %19 = vector.load %arg12[%c18, %c0_17] : memref<128x32xf32, #tpu.memory_space<vmem>>, vector<6x32xf32>
    %20 = tpu.concatenate %17, %18, %19 in 0 : vector<6x32xf32>, vector<6x32xf32>, vector<6x32xf32> -> vector<18x32xf32>
    %c34 = arith.constant 34 : index
    %c0_18 = arith.constant 0 : index
    %21 = vector.load %arg12[%c34, %c0_18] : memref<128x32xf32, #tpu.memory_space<vmem>>, vector<6x32xf32>
    %c42 = arith.constant 42 : index
    %c0_19 = arith.constant 0 : index
    %22 = vector.load %arg12[%c42, %c0_19] : memref<128x32xf32, #tpu.memory_space<vmem>>, vector<6x32xf32>
    %c50 = arith.constant 50 : index
    %c0_20 = arith.constant 0 : index
    %23 = vector.load %arg12[%c50, %c0_20] : memref<128x32xf32, #tpu.memory_space<vmem>>, vector<6x32xf32>
    %24 = tpu.concatenate %21, %22, %23 in 0 : vector<6x32xf32>, vector<6x32xf32>, vector<6x32xf32> -> vector<18x32xf32>
    %c64 = arith.constant 64 : index
    %c0_21 = arith.constant 0 : index
    %25 = vector.load %arg12[%c64, %c0_21] : memref<128x32xf32, #tpu.memory_space<vmem>>, vector<6x32xf32>
    %c72 = arith.constant 72 : index
    %c0_22 = arith.constant 0 : index
    %26 = vector.load %arg12[%c72, %c0_22] : memref<128x32xf32, #tpu.memory_space<vmem>>, vector<6x32xf32>
    %c80 = arith.constant 80 : index
    %c0_23 = arith.constant 0 : index
    %27 = vector.load %arg12[%c80, %c0_23] : memref<128x32xf32, #tpu.memory_space<vmem>>, vector<6x32xf32>
    %28 = tpu.concatenate %25, %26, %27 in 0 : vector<6x32xf32>, vector<6x32xf32>, vector<6x32xf32> -> vector<18x32xf32>
    %c96 = arith.constant 96 : index
    %c0_24 = arith.constant 0 : index
    %29 = vector.load %arg12[%c96, %c0_24] : memref<128x32xf32, #tpu.memory_space<vmem>>, vector<6x32xf32>
    %c104 = arith.constant 104 : index
    %c0_25 = arith.constant 0 : index
    %30 = vector.load %arg12[%c104, %c0_25] : memref<128x32xf32, #tpu.memory_space<vmem>>, vector<6x32xf32>
    %c112 = arith.constant 112 : index
    %c0_26 = arith.constant 0 : index
    %31 = vector.load %arg12[%c112, %c0_26] : memref<128x32xf32, #tpu.memory_space<vmem>>, vector<6x32xf32>
    %32 = tpu.concatenate %29, %30, %31 in 0 : vector<6x32xf32>, vector<6x32xf32>, vector<6x32xf32> -> vector<18x32xf32>
    %c66 = arith.constant 66 : index
    %c0_27 = arith.constant 0 : index
    %33 = vector.load %arg12[%c66, %c0_27] : memref<128x32xf32, #tpu.memory_space<vmem>>, vector<6x32xf32>
    %c74 = arith.constant 74 : index
    %c0_28 = arith.constant 0 : index
    %34 = vector.load %arg12[%c74, %c0_28] : memref<128x32xf32, #tpu.memory_space<vmem>>, vector<6x32xf32>
    %c82 = arith.constant 82 : index
    %c0_29 = arith.constant 0 : index
    %35 = vector.load %arg12[%c82, %c0_29] : memref<128x32xf32, #tpu.memory_space<vmem>>, vector<6x32xf32>
    %36 = tpu.concatenate %33, %34, %35 in 0 : vector<6x32xf32>, vector<6x32xf32>, vector<6x32xf32> -> vector<18x32xf32>
    %c98 = arith.constant 98 : index
    %c0_30 = arith.constant 0 : index
    %37 = vector.load %arg12[%c98, %c0_30] : memref<128x32xf32, #tpu.memory_space<vmem>>, vector<6x32xf32>
    %c106 = arith.constant 106 : index
    %c0_31 = arith.constant 0 : index
    %38 = vector.load %arg12[%c106, %c0_31] : memref<128x32xf32, #tpu.memory_space<vmem>>, vector<6x32xf32>
    %c114 = arith.constant 114 : index
    %c0_32 = arith.constant 0 : index
    %39 = vector.load %arg12[%c114, %c0_32] : memref<128x32xf32, #tpu.memory_space<vmem>>, vector<6x32xf32>
    %40 = tpu.concatenate %37, %38, %39 in 0 : vector<6x32xf32>, vector<6x32xf32>, vector<6x32xf32> -> vector<18x32xf32>
    %c8_33 = arith.constant 8 : index
    %c0_34 = arith.constant 0 : index
    %41 = vector.load %arg12[%c8_33, %c0_34] : memref<128x32xf32, #tpu.memory_space<vmem>>, vector<6x32xf32>
    %c16_35 = arith.constant 16 : index
    %c0_36 = arith.constant 0 : index
    %42 = vector.load %arg12[%c16_35, %c0_36] : memref<128x32xf32, #tpu.memory_space<vmem>>, vector<6x32xf32>
    %c24 = arith.constant 24 : index
    %c0_37 = arith.constant 0 : index
    %43 = vector.load %arg12[%c24, %c0_37] : memref<128x32xf32, #tpu.memory_space<vmem>>, vector<6x32xf32>
    %44 = tpu.concatenate %41, %42, %43 in 0 : vector<6x32xf32>, vector<6x32xf32>, vector<6x32xf32> -> vector<18x32xf32>
    %c40_38 = arith.constant 40 : index
    %c0_39 = arith.constant 0 : index
    %45 = vector.load %arg12[%c40_38, %c0_39] : memref<128x32xf32, #tpu.memory_space<vmem>>, vector<6x32xf32>
    %c48_40 = arith.constant 48 : index
    %c0_41 = arith.constant 0 : index
    %46 = vector.load %arg12[%c48_40, %c0_41] : memref<128x32xf32, #tpu.memory_space<vmem>>, vector<6x32xf32>
    %c56 = arith.constant 56 : index
    %c0_42 = arith.constant 0 : index
    %47 = vector.load %arg12[%c56, %c0_42] : memref<128x32xf32, #tpu.memory_space<vmem>>, vector<6x32xf32>
    %48 = tpu.concatenate %45, %46, %47 in 0 : vector<6x32xf32>, vector<6x32xf32>, vector<6x32xf32> -> vector<18x32xf32>
    %c10_43 = arith.constant 10 : index
    %c0_44 = arith.constant 0 : index
    %49 = vector.load %arg12[%c10_43, %c0_44] : memref<128x32xf32, #tpu.memory_space<vmem>>, vector<6x32xf32>
    %c18_45 = arith.constant 18 : index
    %c0_46 = arith.constant 0 : index
    %50 = vector.load %arg12[%c18_45, %c0_46] : memref<128x32xf32, #tpu.memory_space<vmem>>, vector<6x32xf32>
    %c26 = arith.constant 26 : index
    %c0_47 = arith.constant 0 : index
    %51 = vector.load %arg12[%c26, %c0_47] : memref<128x32xf32, #tpu.memory_space<vmem>>, vector<6x32xf32>
    %52 = tpu.concatenate %49, %50, %51 in 0 : vector<6x32xf32>, vector<6x32xf32>, vector<6x32xf32> -> vector<18x32xf32>
    %c42_48 = arith.constant 42 : index
    %c0_49 = arith.constant 0 : index
    %53 = vector.load %arg12[%c42_48, %c0_49] : memref<128x32xf32, #tpu.memory_space<vmem>>, vector<6x32xf32>
    %c50_50 = arith.constant 50 : index
    %c0_51 = arith.constant 0 : index
    %54 = vector.load %arg12[%c50_50, %c0_51] : memref<128x32xf32, #tpu.memory_space<vmem>>, vector<6x32xf32>
    %c58 = arith.constant 58 : index
    %c0_52 = arith.constant 0 : index
    %55 = vector.load %arg12[%c58, %c0_52] : memref<128x32xf32, #tpu.memory_space<vmem>>, vector<6x32xf32>
    %56 = tpu.concatenate %53, %54, %55 in 0 : vector<6x32xf32>, vector<6x32xf32>, vector<6x32xf32> -> vector<18x32xf32>
    %c72_53 = arith.constant 72 : index
    %c0_54 = arith.constant 0 : index
    %57 = vector.load %arg12[%c72_53, %c0_54] : memref<128x32xf32, #tpu.memory_space<vmem>>, vector<6x32xf32>
    %c80_55 = arith.constant 80 : index
    %c0_56 = arith.constant 0 : index
    %58 = vector.load %arg12[%c80_55, %c0_56] : memref<128x32xf32, #tpu.memory_space<vmem>>, vector<6x32xf32>
    %c88 = arith.constant 88 : index
    %c0_57 = arith.constant 0 : index
    %59 = vector.load %arg12[%c88, %c0_57] : memref<128x32xf32, #tpu.memory_space<vmem>>, vector<6x32xf32>
    %60 = tpu.concatenate %57, %58, %59 in 0 : vector<6x32xf32>, vector<6x32xf32>, vector<6x32xf32> -> vector<18x32xf32>
    %c104_58 = arith.constant 104 : index
    %c0_59 = arith.constant 0 : index
    %61 = vector.load %arg12[%c104_58, %c0_59] : memref<128x32xf32, #tpu.memory_space<vmem>>, vector<6x32xf32>
    %c112_60 = arith.constant 112 : index
    %c0_61 = arith.constant 0 : index
    %62 = vector.load %arg12[%c112_60, %c0_61] : memref<128x32xf32, #tpu.memory_space<vmem>>, vector<6x32xf32>
    %c120 = arith.constant 120 : index
    %c0_62 = arith.constant 0 : index
    %63 = vector.load %arg12[%c120, %c0_62] : memref<128x32xf32, #tpu.memory_space<vmem>>, vector<6x32xf32>
    %64 = tpu.concatenate %61, %62, %63 in 0 : vector<6x32xf32>, vector<6x32xf32>, vector<6x32xf32> -> vector<18x32xf32>
    %c74_63 = arith.constant 74 : index
    %c0_64 = arith.constant 0 : index
    %65 = vector.load %arg12[%c74_63, %c0_64] : memref<128x32xf32, #tpu.memory_space<vmem>>, vector<6x32xf32>
    %c82_65 = arith.constant 82 : index
    %c0_66 = arith.constant 0 : index
    %66 = vector.load %arg12[%c82_65, %c0_66] : memref<128x32xf32, #tpu.memory_space<vmem>>, vector<6x32xf32>
    %c90 = arith.constant 90 : index
    %c0_67 = arith.constant 0 : index
    %67 = vector.load %arg12[%c90, %c0_67] : memref<128x32xf32, #tpu.memory_space<vmem>>, vector<6x32xf32>
    %68 = tpu.concatenate %65, %66, %67 in 0 : vector<6x32xf32>, vector<6x32xf32>, vector<6x32xf32> -> vector<18x32xf32>
    %c106_68 = arith.constant 106 : index
    %c0_69 = arith.constant 0 : index
    %69 = vector.load %arg12[%c106_68, %c0_69] : memref<128x32xf32, #tpu.memory_space<vmem>>, vector<6x32xf32>
    %c114_70 = arith.constant 114 : index
    %c0_71 = arith.constant 0 : index
    %70 = vector.load %arg12[%c114_70, %c0_71] : memref<128x32xf32, #tpu.memory_space<vmem>>, vector<6x32xf32>
    %c122 = arith.constant 122 : index
    %c0_72 = arith.constant 0 : index
    %71 = vector.load %arg12[%c122, %c0_72] : memref<128x32xf32, #tpu.memory_space<vmem>>, vector<6x32xf32>
    %72 = tpu.concatenate %69, %70, %71 in 0 : vector<6x32xf32>, vector<6x32xf32>, vector<6x32xf32> -> vector<18x32xf32>
    %73 = tpu.concatenate %12, %16, %20, %24, %28, %32, %36, %40, %44, %48, %52, %56, %60, %64, %68, %72 in 1 : vector<18x32xf32>, vector<18x32xf32>, vector<18x32xf32>, vector<18x32xf32>, vector<18x32xf32>, vector<18x32xf32>, vector<18x32xf32>, vector<18x32xf32>, vector<18x32xf32>, vector<18x32xf32>, vector<18x32xf32>, vector<18x32xf32>, vector<18x32xf32>, vector<18x32xf32>, vector<18x32xf32>, vector<18x32xf32> -> vector<18x512xf32>
    %c0_73 = arith.constant 0 : index
    %c0_74 = arith.constant 0 : index
    %74 = vector.load %arg3[%c0_73, %c0_74] : memref<512x64xf32, #tpu.memory_space<vmem>>, vector<512x64xf32>
    %cst_75 = arith.constant dense<0.000000e+00> : vector<18x64xf32>
    %75 = tpu.matmul %73, %74, %cst_75 {dimension_numbers = #tpu.dot_dimension_numbers<[1], [0], [0], [1], [0, 0, 1, 1], [], []>} : vector<18x512xf32>, vector<512x64xf32>, vector<18x64xf32> -> vector<18x64xf32>
    %c0_76 = arith.constant 0 : index
    %c0_77 = arith.constant 0 : index
    %76 = vector.load %arg4[%c0_76, %c0_77] : memref<1x64xf32, #tpu.memory_space<vmem>>, vector<1x64xf32>
    %77 = vector.broadcast %76 : vector<1x64xf32> to vector<18x64xf32>
    %78 = arith.addf %75, %77 : vector<18x64xf32>
    %cst_78 = arith.constant 0.000000e+00 : f32
    %79 = vector.broadcast %cst_78 : f32 to vector<18x64xf32>
    %80 = arith.maximumf %78, %79 : vector<18x64xf32>
    %c0_79 = arith.constant 0 : index
    %c0_80 = arith.constant 0 : index
    %81 = vector.load %arg13[%c0_79, %c0_80] : memref<18x64xf32, #tpu.memory_space<vmem>>, vector<18x64xf32>
    tpu.vector_store %arg13[%c0_79, %c0_80], %80 {strides = array<i32>} : memref<18x64xf32, #tpu.memory_space<vmem>>, vector<18x64xf32>,
    %c0_81 = arith.constant 0 : index
    %c0_82 = arith.constant 0 : index
    %82 = vector.load %arg13[%c0_81, %c0_82] : memref<18x64xf32, #tpu.memory_space<vmem>>, vector<2x64xf32>
    %c2_83 = arith.constant 2 : index
    %c0_84 = arith.constant 0 : index
    %83 = vector.load %arg13[%c2_83, %c0_84] : memref<18x64xf32, #tpu.memory_space<vmem>>, vector<2x64xf32>
    %c4 = arith.constant 4 : index
    %c0_85 = arith.constant 0 : index
    %84 = vector.load %arg13[%c4, %c0_85] : memref<18x64xf32, #tpu.memory_space<vmem>>, vector<2x64xf32>
    %c6 = arith.constant 6 : index
    %c0_86 = arith.constant 0 : index
    %85 = vector.load %arg13[%c6, %c0_86] : memref<18x64xf32, #tpu.memory_space<vmem>>, vector<2x64xf32>
    %c8_87 = arith.constant 8 : index
    %c0_88 = arith.constant 0 : index
    %86 = vector.load %arg13[%c8_87, %c0_88] : memref<18x64xf32, #tpu.memory_space<vmem>>, vector<2x64xf32>
    %c10_89 = arith.constant 10 : index
    %c0_90 = arith.constant 0 : index
    %87 = vector.load %arg13[%c10_89, %c0_90] : memref<18x64xf32, #tpu.memory_space<vmem>>, vector<2x64xf32>
    %c12 = arith.constant 12 : index
    %c0_91 = arith.constant 0 : index
    %88 = vector.load %arg13[%c12, %c0_91] : memref<18x64xf32, #tpu.memory_space<vmem>>, vector<2x64xf32>
    %c14 = arith.constant 14 : index
    %c0_92 = arith.constant 0 : index
    %89 = vector.load %arg13[%c14, %c0_92] : memref<18x64xf32, #tpu.memory_space<vmem>>, vector<2x64xf32>
    %c16_93 = arith.constant 16 : index
    %c0_94 = arith.constant 0 : index
    %90 = vector.load %arg13[%c16_93, %c0_94] : memref<18x64xf32, #tpu.memory_space<vmem>>, vector<2x64xf32>
    %91 = tpu.concatenate %82, %83, %84, %85, %86, %87, %88, %89, %90 in 1 : vector<2x64xf32>, vector<2x64xf32>, vector<2x64xf32>, vector<2x64xf32>, vector<2x64xf32>, vector<2x64xf32>, vector<2x64xf32>, vector<2x64xf32>, vector<2x64xf32> -> vector<2x576xf32>
    %c0_95 = arith.constant 0 : index
    %c0_96 = arith.constant 0 : index
    %92 = vector.load %arg5[%c0_95, %c0_96] : memref<576x64xf32, #tpu.memory_space<vmem>>, vector<576x64xf32>
    %cst_97 = arith.constant dense<0.000000e+00> : vector<2x64xf32>
    %93 = tpu.matmul %91, %92, %cst_97 {dimension_numbers = #tpu.dot_dimension_numbers<[1], [0], [0], [1], [0, 0, 1, 1], [], []>} : vector<2x576xf32>, vector<576x64xf32>, vector<2x64xf32> -> vector<2x64xf32>
    %c0_98 = arith.constant 0 : index
    %c0_99 = arith.constant 0 : index
    %94 = vector.load %arg6[%c0_98, %c0_99] : memref<1x64xf32, #tpu.memory_space<vmem>>, vector<1x64xf32>
    %95 = vector.broadcast %94 : vector<1x64xf32> to vector<2x64xf32>
    %96 = arith.addf %93, %95 : vector<2x64xf32>
    %cst_100 = arith.constant 0.000000e+00 : f32
    %97 = vector.broadcast %cst_100 : f32 to vector<2x64xf32>
    %98 = arith.maximumf %96, %97 : vector<2x64xf32>
    %cst_101 = arith.constant 0.000000e+00 : f32
    %99 = vector.broadcast %cst_101 : f32 to vector<2x512xf32>
    %c0_102 = arith.constant 0 : index
    %c0_103 = arith.constant 0 : index
    %c0_104 = arith.constant 0 : index
    %100 = vector.load %arg7[%c0_102, %c0_103, %c0_104] : memref<1x64x512xf32, #tpu.memory_space<vmem>>, vector<1x64x512xf32>
    %101 = vector.shape_cast %100 : vector<1x64x512xf32> to vector<64x512xf32>
    %cst_105 = arith.constant dense<0.000000e+00> : vector<2x512xf32>
    %102 = tpu.matmul %98, %101, %cst_105 {dimension_numbers = #tpu.dot_dimension_numbers<[1], [0], [0], [1], [0, 0, 1, 1], [], []>} : vector<2x64xf32>, vector<64x512xf32>, vector<2x512xf32> -> vector<2x512xf32>
    %103 = arith.addf %99, %102 : vector<2x512xf32>
    %c0_106 = arith.constant 0 : index
    %c0_107 = arith.constant 0 : index
    %104 = vector.load %arg8[%c0_106, %c0_107] : memref<1x512xf32, #tpu.memory_space<vmem>>, vector<1x512xf32>
    %105 = vector.broadcast %104 : vector<1x512xf32> to vector<2x512xf32>
    %106 = arith.addf %103, %105 : vector<2x512xf32>
    %cst_108 = arith.constant 0.000000e+00 : f32
    %107 = vector.broadcast %cst_108 : f32 to vector<2x512xf32>
    %108 = arith.maximumf %106, %107 : vector<2x512xf32>
    %c0_109 = arith.constant 0 : index
    %c0_110 = arith.constant 0 : index
    %109 = vector.load %arg9[%c0_109, %c0_110] : memref<512x7xf32, #tpu.memory_space<vmem>>, vector<512x7xf32>
    %cst_111 = arith.constant dense<0.000000e+00> : vector<2x7xf32>
    %110 = tpu.matmul %108, %109, %cst_111 {dimension_numbers = #tpu.dot_dimension_numbers<[1], [0], [0], [1], [0, 0, 1, 1], [], []>} : vector<2x512xf32>, vector<512x7xf32>, vector<2x7xf32> -> vector<2x7xf32>
    %c0_112 = arith.constant 0 : index
    %c0_113 = arith.constant 0 : index
    %111 = vector.load %arg10[%c0_112, %c0_113] : memref<1x7xf32, #tpu.memory_space<vmem>>, vector<1x7xf32>
    %112 = vector.broadcast %111 : vector<1x7xf32> to vector<2x7xf32>
    %113 = arith.addf %110, %112 : vector<2x7xf32>
    %114 = vector.extract_strided_slice %113 {offsets = [0, 0], sizes = [2, 1], strides = [1, 1]} : vector<2x7xf32> to vector<2x1xf32>
    %115 = vector.extract_strided_slice %113 {offsets = [0, 1], sizes = [2, 6], strides = [1, 1]} : vector<2x7xf32> to vector<2x6xf32>
    %116 = vector.broadcast %114 : vector<2x1xf32> to vector<2x6xf32>
    %117 = arith.addf %116, %115 : vector<2x6xf32>
    %118 = vector.shape_cast %115 : vector<2x6xf32> to vector<1x2x6xf32>
    %cst_114 = arith.constant dense<0.000000e+00> : vector<1xf32>
    %119 = vector.multi_reduction <add>, %118, %cst_114 [1, 2] : vector<1x2x6xf32> to vector<1xf32>
    %120 = vector.shape_cast %119 : vector<1xf32> to vector<1x1x1xf32>
    %121 = vector.extract %120[0, 0, 0] : f32 from vector<1x1x1xf32>
    %cst_115 = arith.constant 1.200000e+01 : f32
    %122 = arith.divf %121, %cst_115 : f32
    %123 = vector.broadcast %122 : f32 to vector<2x6xf32>
    %124 = arith.subf %117, %123 : vector<2x6xf32>
    %c0_116 = arith.constant 0 : index
    %c0_117 = arith.constant 0 : index
    %125 = vector.load %arg11[%c0_116, %c0_117] : memref<2x6xf32, #tpu.memory_space<vmem>>, vector<2x6xf32>
    tpu.vector_store %arg11[%c0_116, %c0_117], %124 {strides = array<i32>} : memref<2x6xf32, #tpu.memory_space<vmem>>, vector<2x6xf32>,
    return
  }
}

</mosaic_0001>

<llo_original>
// kernel: qnetwork_forward.1
$region0: #{qnetwork_forward.1}
  #allocation0 [shape = 'u32[]', space=smem, size = 0x4, offset = 0x4, fixed_abs, tag = 'smem constant byte address 0x4 - core index']
  #allocation1 [shape = 'u32[144,128]{1,0:T(1,128)}', space=vmem, size = 0x12000, scoped, tag = 'internal scratch']
  #allocation2 [shape = 'f32[128,32]{1,0:T(8,128)}', space=vmem, size = 0x10000, scoped, tag = 'scratch operand']
  #allocation3 [shape = 'f32[18,64]{1,0:T(8,128)}', space=vmem, size = 0x3000, scoped, tag = 'scratch operand']
  %s0 = inlined_call_operand.vmem [shape: f32[128,256], index: 0, kind: input, shape index: {}]
  %s1 = inlined_call_operand.vmem [shape: f32[256,32], index: 1, kind: input, shape index: {}]
  %s2 = inlined_call_operand.vmem [shape: f32[1,32], index: 2, kind: input, shape index: {}]
  %s3 = inlined_call_operand.vmem [shape: f32[512,64], index: 3, kind: input, shape index: {}]
  %s4 = inlined_call_operand.vmem [shape: f32[1,64], index: 4, kind: input, shape index: {}]
  %s5 = inlined_call_operand.vmem [shape: f32[576,64], index: 5, kind: input, shape index: {}]
  %s6 = inlined_call_operand.vmem [shape: f32[1,64], index: 6, kind: input, shape index: {}]
  %s7 = inlined_call_operand.vmem [shape: f32[1,64,512], index: 7, kind: input, shape index: {}]
  %s8 = inlined_call_operand.vmem [shape: f32[1,512], index: 8, kind: input, shape index: {}]
  %s9 = inlined_call_operand.vmem [shape: f32[512,7], index: 9, kind: input, shape index: {}]
  %s10 = inlined_call_operand.vmem [shape: f32[1,7], index: 10, kind: input, shape index: {}]
  %s11 = inlined_call_operand.hbm [shape: f32[2,6], index: 11, kind: output, shape index: {}]
  %s12 = sld [smem:[#allocation0]]
  $region54: #{qnetwork_forward.1} parent=0
    _
  %s14 = ssub.s32 1, %s12
  %s15 = scalar_select 0, %s14, %s12
  $region1: #{qnetwork_forward.1} parent=0
    #allocation4 [shape = 'u8[1024]{0}', space=vmem, size = 0x400, scoped, tag = 'output window, operand 0, single buffered']
    #allocation5 [shape = 's32[1]{0}', space=sflag, size = 0x4, scoped, tag = 'scoped memory for qnetwork_forward.1']
    %16 = vsyncpa [#allocation5], 0
    // Predicated region
    $region2: #{qnetwork_forward.1} parent=1 // pred_check
      _
    $region3: #{qnetwork_forward.1} parent=1 // pred_check_branch
      %18 = sbr.rel (0) target = $region5
    $region4: #{qnetwork_forward.1} parent=1 // pred_region
      _
    $region5: #{qnetwork_forward.1} parent=1 // pred_fallthru
      _
    // Predicated region
    $region6: #{qnetwork_forward.1} parent=1 // pred_check
      _
    $region7: #{qnetwork_forward.1} parent=1 // pred_check_branch
      %20 = sbr.rel (0) target = $region9
    $region8: #{qnetwork_forward.1} parent=1 // pred_region
      _
    $region9: #{qnetwork_forward.1} parent=1 // pred_fallthru
      _
    // Predicated region
    $region10: #{qnetwork_forward.1} parent=1 // pred_check
      _
    $region11: #{qnetwork_forward.1} parent=1 // pred_check_branch
      %22 = sbr.rel (0) target = $region13
    $region12: #{qnetwork_forward.1} parent=1 // pred_region
      _
    $region13: #{qnetwork_forward.1} parent=1 // pred_fallthru
      _
    // Predicated region
    $region14: #{qnetwork_forward.1} parent=1 // pred_check
      _
    $region15: #{qnetwork_forward.1} parent=1 // pred_check_branch
      %24 = sbr.rel (0) target = $region17
    $region16: #{qnetwork_forward.1} parent=1 // pred_region
      _
    $region17: #{qnetwork_forward.1} parent=1 // pred_fallthru
      _
    // Predicated region
    $region18: #{qnetwork_forward.1} parent=1 // pred_check
      _
    $region19: #{qnetwork_forward.1} parent=1 // pred_check_branch
      %26 = sbr.rel (0) target = $region21
    $region20: #{qnetwork_forward.1} parent=1 // pred_region
      _
    $region21: #{qnetwork_forward.1} parent=1 // pred_fallthru
      _
    // Predicated region
    $region22: #{qnetwork_forward.1} parent=1 // pred_check
      _
    $region23: #{qnetwork_forward.1} parent=1 // pred_check_branch
      %28 = sbr.rel (0) target = $region25
    $region24: #{qnetwork_forward.1} parent=1 // pred_region
      _
    $region25: #{qnetwork_forward.1} parent=1 // pred_fallthru
      _
    // Predicated region
    $region26: #{qnetwork_forward.1} parent=1 // pred_check
      _
    $region27: #{qnetwork_forward.1} parent=1 // pred_check_branch
      %30 = sbr.rel (0) target = $region29
    $region28: #{qnetwork_forward.1} parent=1 // pred_region
      _
    $region29: #{qnetwork_forward.1} parent=1 // pred_fallthru
      _
    // Predicated region
    $region30: #{qnetwork_forward.1} parent=1 // pred_check
      _
    $region31: #{qnetwork_forward.1} parent=1 // pred_check_branch
      %32 = sbr.rel (0) target = $region33
    $region32: #{qnetwork_forward.1} parent=1 // pred_region
      _
    $region33: #{qnetwork_forward.1} parent=1 // pred_fallthru
      _
    // Predicated region
    $region34: #{qnetwork_forward.1} parent=1 // pred_check
      _
    $region35: #{qnetwork_forward.1} parent=1 // pred_check_branch
      %34 = sbr.rel (0) target = $region37
    $region36: #{qnetwork_forward.1} parent=1 // pred_region
      _
    $region37: #{qnetwork_forward.1} parent=1 // pred_fallthru
      _
    // Predicated region
    $region38: #{qnetwork_forward.1} parent=1 // pred_check
      _
    $region39: #{qnetwork_forward.1} parent=1 // pred_check_branch
      %36 = sbr.rel (0) target = $region41
    $region40: #{qnetwork_forward.1} parent=1 // pred_region
      _
    $region41: #{qnetwork_forward.1} parent=1 // pred_fallthru
      _
    // Predicated region
    $region42: #{qnetwork_forward.1} parent=1 // pred_check
      _
    $region43: #{qnetwork_forward.1} parent=1 // pred_check_branch
      %38 = sbr.rel (0) target = $region45
    $region44: #{qnetwork_forward.1} parent=1 // pred_region
      _
    $region45: #{qnetwork_forward.1} parent=1 // pred_fallthru
      _
    %v39 = vld [vmem:[%s0] sm:$0xff]
    %v40 = vld [vmem:[%s0 + $0x8] sm:$0xff]
    %v41 = vld [vmem:[%s0 + $0x10] sm:$0xff]
    %v42 = vld [vmem:[%s0 + $0x18] sm:$0xff]
    %v43 = vld [vmem:[%s0 + $0x20] sm:$0xff]
    %v44 = vld [vmem:[%s0 + $0x28] sm:$0xff]
    %v45 = vld [vmem:[%s0 + $0x30] sm:$0xff]
    %v46 = vld [vmem:[%s0 + $0x38] sm:$0xff]
    %v47 = vld [vmem:[%s0 + $0x40] sm:$0xff]
    %v48 = vld [vmem:[%s0 + $0x48] sm:$0xff]
    %v49 = vld [vmem:[%s0 + $0x50] sm:$0xff]
    %v50 = vld [vmem:[%s0 + $0x58] sm:$0xff]
    %v51 = vld [vmem:[%s0 + $0x60] sm:$0xff]
    %v52 = vld [vmem:[%s0 + $0x68] sm:$0xff]
    %v53 = vld [vmem:[%s0 + $0x70] sm:$0xff]
    %v54 = vld [vmem:[%s0 + $0x78] sm:$0xff]
    %v55 = vld [vmem:[%s0 + $0x80] sm:$0xff]
    %v56 = vld [vmem:[%s0 + $0x88] sm:$0xff]
    %v57 = vld [vmem:[%s0 + $0x90] sm:$0xff]
    %v58 = vld [vmem:[%s0 + $0x98] sm:$0xff]
    %v59 = vld [vmem:[%s0 + $0xa0] sm:$0xff]
    %v60 = vld [vmem:[%s0 + $0xa8] sm:$0xff]
    %v61 = vld [vmem:[%s0 + $0xb0] sm:$0xff]
    %v62 = vld [vmem:[%s0 + $0xb8] sm:$0xff]
    %v63 = vld [vmem:[%s0 + $0xc0] sm:$0xff]
    %v64 = vld [vmem:[%s0 + $0xc8] sm:$0xff]
    %v65 = vld [vmem:[%s0 + $0xd0] sm:$0xff]
    %v66 = vld [vmem:[%s0 + $0xd8] sm:$0xff]
    %v67 = vld [vmem:[%s0 + $0xe0] sm:$0xff]
    %v68 = vld [vmem:[%s0 + $0xe8] sm:$0xff]
    %v69 = vld [vmem:[%s0 + $0xf0] sm:$0xff]
    %v70 = vld [vmem:[%s0 + $0xf8] sm:$0xff]
    %v71 = vld [vmem:[%s1] sm:$0xff]
    %v72 = vld [vmem:[%s1 + $0x8] sm:$0xff]
    %v73 = vld [vmem:[%s1 + $0x10] sm:$0xff]
    %v74 = vld [vmem:[%s1 + $0x18] sm:$0xff]
    %v75 = vld [vmem:[%s1 + $0x20] sm:$0xff]
    %v76 = vld [vmem:[%s1 + $0x28] sm:$0xff]
    %v77 = vld [vmem:[%s1 + $0x30] sm:$0xff]
    %v78 = vld [vmem:[%s1 + $0x38] sm:$0xff]
    %v79 = vld [vmem:[%s1 + $0x40] sm:$0xff]
    %v80 = vld [vmem:[%s1 + $0x48] sm:$0xff]
    %v81 = vld [vmem:[%s1 + $0x50] sm:$0xff]
    %v82 = vld [vmem:[%s1 + $0x58] sm:$0xff]
    %v83 = vld [vmem:[%s1 + $0x60] sm:$0xff]
    %v84 = vld [vmem:[%s1 + $0x68] sm:$0xff]
    %v85 = vld [vmem:[%s1 + $0x70] sm:$0xff]
    %v86 = vld [vmem:[%s1 + $0x78] sm:$0xff]
    %v87 = vld [vmem:[%s1 + $0x80] sm:$0xff]
    %v88 = vld [vmem:[%s1 + $0x88] sm:$0xff]
    %v89 = vld [vmem:[%s1 + $0x90] sm:$0xff]
    %v90 = vld [vmem:[%s1 + $0x98] sm:$0xff]
    %v91 = vld [vmem:[%s1 + $0xa0] sm:$0xff]
    %v92 = vld [vmem:[%s1 + $0xa8] sm:$0xff]
    %v93 = vld [vmem:[%s1 + $0xb0] sm:$0xff]
    %v94 = vld [vmem:[%s1 + $0xb8] sm:$0xff]
    %v95 = vld [vmem:[%s1 + $0xc0] sm:$0xff]
    %v96 = vld [vmem:[%s1 + $0xc8] sm:$0xff]
    %v97 = vld [vmem:[%s1 + $0xd0] sm:$0xff]
    %v98 = vld [vmem:[%s1 + $0xd8] sm:$0xff]
    %v99 = vld [vmem:[%s1 + $0xe0] sm:$0xff]
    %v100 = vld [vmem:[%s1 + $0xe8] sm:$0xff]
    %v101 = vld [vmem:[%s1 + $0xf0] sm:$0xff]
    %v102 = vld [vmem:[%s1 + $0xf8] sm:$0xff]
    %v103 = vld [vmem:[%s2] sm:$0x1]
    %v105 = vlaneseq
    %v106 = vshrl.u32 %v105, 7
    %v107 = vsub.s32 0, %v106
    %v108 = vrot.slane %v103, %v107
    %110 = vmatprep.subr.mxu0 0.0
    %111 = vmatpush1.msra.mxu0 %v71
    %112 = vmatprep.subr.mxu0 0.0
    %113 = vmatpush1.msra.mxu0 %v72
    %114 = vmatprep.subr.mxu0 0.0
    %115 = vmatpush1.msra.mxu0 %v73
    %116 = vmatprep.subr.mxu0 0.0
    %117 = vmatpush1.msra.mxu0 %v74
    %118 = vmatprep.subr.mxu0 0.0
    %119 = vmatpush1.msra.mxu0 %v75
    %120 = vmatprep.subr.mxu0 0.0
    %121 = vmatpush1.msra.mxu0 %v76
    %122 = vmatprep.subr.mxu0 0.0
    %123 = vmatpush1.msra.mxu0 %v77
    %124 = vmatprep.subr.mxu0 0.0
    %125 = vmatpush1.msra.mxu0 %v78
    %126 = vmatprep.subr.mxu0 0.0
    %127 = vmatpush1.msra.mxu0 %v79
    %128 = vmatprep.subr.mxu0 0.0
    %129 = vmatpush1.msra.mxu0 %v80
    %130 = vmatprep.subr.mxu0 0.0
    %131 = vmatpush1.msra.mxu0 %v81
    %132 = vmatprep.subr.mxu0 0.0
    %133 = vmatpush1.msra.mxu0 %v82
    %134 = vmatprep.subr.mxu0 0.0
    %135 = vmatpush1.msra.mxu0 %v83
    %136 = vmatprep.subr.mxu0 0.0
    %137 = vmatpush1.msra.mxu0 %v84
    %138 = vmatprep.subr.mxu0 0.0
    %139 = vmatpush1.msra.mxu0 %v85
    %140 = vmatprep.subr.mxu0 0.0
    %141 = vmatpush1.msra.mxu0 %v86
    %142 = vmatprep.subr.mxu0 0.0
    %143 = vmatpush1.msra.mxu0 %v87
    %144 = vmatprep.subr.mxu0 0.0
    %145 = vmatpush1.msra.mxu0 %v88
    %146 = vmatprep.subr.mxu0 0.0
    %147 = vmatpush1.msra.mxu0 %v89
    %148 = vmatprep.subr.mxu0 0.0
    %149 = vmatpush1.msra.mxu0 %v90
    %150 = vmatprep.subr.mxu0 0.0
    %151 = vmatpush1.msra.mxu0 %v91
    %152 = vmatprep.subr.mxu0 0.0
    %153 = vmatpush1.msra.mxu0 %v92
    %154 = vmatprep.subr.mxu0 0.0
    %155 = vmatpush1.msra.mxu0 %v93
    %156 = vmatprep.subr.mxu0 0.0
    %157 = vmatpush1.msra.mxu0 %v94
    %158 = vmatprep.subr.mxu0 0.0
    %159 = vmatpush1.msra.mxu0 %v95
    %160 = vmatprep.subr.mxu0 0.0
    %161 = vmatpush1.msra.mxu0 %v96
    %162 = vmatprep.subr.mxu0 0.0
    %163 = vmatpush1.msra.mxu0 %v97
    %164 = vmatprep.subr.mxu0 0.0
    %165 = vmatpush1.msra.mxu0 %v98
    %166 = vmatprep.subr.mxu0 0.0
    %167 = vmatpush1.msra.mxu0 %v99
    %168 = vmatprep.subr.mxu0 0.0
    %169 = vmatpush1.msra.mxu0 %v100
    %170 = vmatprep.subr.mxu0 0.0
    %171 = vmatpush1.msra.mxu0 %v101
    %172 = vmatprep.subr.mxu0 0.0
    %173 = vmatpush1.msra.mxu0 %v102
    %174 = vmatprep.mubr.f32.mxu0 %v40
    %175 = vmatmul.mubr.f32.gmra.mrb[0].mxu0 %v39
    %v176 = vpop.f32.mrb[0].mxu0
    %v177 = vadd.f32 %v108, %v176
    %v178 = vpop.f32.mrb[0].mxu0
    %179 = vmatprep.mubr.f32.mxu0 %v42
    %180 = vmatmul.mubr.f32.gmra.mrb[0].mxu0 %v41
    %v181 = vpop.f32.mrb[0].mxu0
    %v182 = vadd.f32 %v108, %v181
    %v183 = vpop.f32.mrb[0].mxu0
    %184 = vmatprep.mubr.f32.mxu0 %v44
    %185 = vmatmul.mubr.f32.gmra.mrb[0].mxu0 %v43
    %v186 = vpop.f32.mrb[0].mxu0
    %v187 = vadd.f32 %v108, %v186
    %v188 = vpop.f32.mrb[0].mxu0
    %189 = vmatprep.mubr.f32.mxu0 %v46
    %190 = vmatmul.mubr.f32.gmra.mrb[0].mxu0 %v45
    %v191 = vpop.f32.mrb[0].mxu0
    %v192 = vadd.f32 %v108, %v191
    %v193 = vpop.f32.mrb[0].mxu0
    %194 = vmatprep.mubr.f32.mxu0 %v48
    %195 = vmatmul.mubr.f32.gmra.mrb[0].mxu0 %v47
    %v196 = vpop.f32.mrb[0].mxu0
    %v197 = vadd.f32 %v108, %v196
    %v198 = vpop.f32.mrb[0].mxu0
    %199 = vmatprep.mubr.f32.mxu0 %v50
    %200 = vmatmul.mubr.f32.gmra.mrb[0].mxu0 %v49
    %v201 = vpop.f32.mrb[0].mxu0
    %v202 = vadd.f32 %v108, %v201
    %v203 = vpop.f32.mrb[0].mxu0
    %204 = vmatprep.mubr.f32.mxu0 %v52
    %205 = vmatmul.mubr.f32.gmra.mrb[0].mxu0 %v51
    %v206 = vpop.f32.mrb[0].mxu0
    %v207 = vadd.f32 %v108, %v206
    %v208 = vpop.f32.mrb[0].mxu0
    %209 = vmatprep.mubr.f32.mxu0 %v54
    %210 = vmatmul.mubr.f32.gmra.mrb[0].mxu0 %v53
    %v211 = vpop.f32.mrb[0].mxu0
    %v212 = vadd.f32 %v108, %v211
    %v213 = vpop.f32.mrb[0].mxu0
    %214 = vmatprep.mubr.f32.mxu0 %v56
    %215 = vmatmul.mubr.f32.gmra.mrb[0].mxu0 %v55
    %v216 = vpop.f32.mrb[0].mxu0
    %v217 = vadd.f32 %v108, %v216
    %v218 = vpop.f32.mrb[0].mxu0
    %219 = vmatprep.mubr.f32.mxu0 %v58
    %220 = vmatmul.mubr.f32.gmra.mrb[0].mxu0 %v57
    %v221 = vpop.f32.mrb[0].mxu0
    %v222 = vadd.f32 %v108, %v221
    %v223 = vpop.f32.mrb[0].mxu0
    %224 = vmatprep.mubr.f32.mxu0 %v60
    %225 = vmatmul.mubr.f32.gmra.mrb[0].mxu0 %v59
    %v226 = vpop.f32.mrb[0].mxu0
    %v227 = vadd.f32 %v108, %v226
    %v228 = vpop.f32.mrb[0].mxu0
    %229 = vmatprep.mubr.f32.mxu0 %v62
    %230 = vmatmul.mubr.f32.gmra.mrb[0].mxu0 %v61
    %v231 = vpop.f32.mrb[0].mxu0
    %v232 = vadd.f32 %v108, %v231
    %v233 = vpop.f32.mrb[0].mxu0
    %234 = vmatprep.mubr.f32.mxu0 %v64
    %235 = vmatmul.mubr.f32.gmra.mrb[0].mxu0 %v63
    %v236 = vpop.f32.mrb[0].mxu0
    %v237 = vadd.f32 %v108, %v236
    %v238 = vpop.f32.mrb[0].mxu0
    %239 = vmatprep.mubr.f32.mxu0 %v66
    %240 = vmatmul.mubr.f32.gmra.mrb[0].mxu0 %v65
    %v241 = vpop.f32.mrb[0].mxu0
    %v242 = vadd.f32 %v108, %v241
    %v243 = vpop.f32.mrb[0].mxu0
    %244 = vmatprep.mubr.f32.mxu0 %v68
    %245 = vmatmul.mubr.f32.gmra.mrb[0].mxu0 %v67
    %v246 = vpop.f32.mrb[0].mxu0
    %v247 = vadd.f32 %v108, %v246
    %v248 = vpop.f32.mrb[0].mxu0
    %249 = vmatprep.mubr.f32.mxu0 %v70
    %250 = vmatmul.mubr.f32.gmra.mrb[0].mxu0 %v69
    %v251 = vpop.f32.mrb[0].mxu0
    %v252 = vadd.f32 %v108, %v251
    %v253 = vpop.f32.mrb[0].mxu0
    %254 = vdwg.mxu0
    %v255 = vmax.f32 %v177, 0.0
    %v256 = vmax.f32 %v182, 0.0
    %v257 = vmax.f32 %v187, 0.0
    %v258 = vmax.f32 %v192, 0.0
    %v259 = vmax.f32 %v197, 0.0
    %v260 = vmax.f32 %v202, 0.0
    %v261 = vmax.f32 %v207, 0.0
    %v262 = vmax.f32 %v212, 0.0
    %v263 = vmax.f32 %v217, 0.0
    %v264 = vmax.f32 %v222, 0.0
    %v265 = vmax.f32 %v227, 0.0
    %v266 = vmax.f32 %v232, 0.0
    %v267 = vmax.f32 %v237, 0.0
    %v268 = vmax.f32 %v242, 0.0
    %v269 = vmax.f32 %v247, 0.0
    %v270 = vmax.f32 %v252, 0.0
    %vm271 = vcmask 261120
    %272 = vst.msk [vmem:[#allocation2] sm:$0xff] %vm271, %v255
    %273 = vst.msk [vmem:[#allocation2 + $0x8] sm:$0xff] %vm271, %v256
    %274 = vst.msk [vmem:[#allocation2 + $0x10] sm:$0xff] %vm271, %v257
    %275 = vst.msk [vmem:[#allocation2 + $0x18] sm:$0xff] %vm271, %v258
    %276 = vst.msk [vmem:[#allocation2 + $0x20] sm:$0xff] %vm271, %v259
    %277 = vst.msk [vmem:[#allocation2 + $0x28] sm:$0xff] %vm271, %v260
    %278 = vst.msk [vmem:[#allocation2 + $0x30] sm:$0xff] %vm271, %v261
    %279 = vst.msk [vmem:[#allocation2 + $0x38] sm:$0xff] %vm271, %v262
    %280 = vst.msk [vmem:[#allocation2 + $0x40] sm:$0xff] %vm271, %v263
    %281 = vst.msk [vmem:[#allocation2 + $0x48] sm:$0xff] %vm271, %v264
    %282 = vst.msk [vmem:[#allocation2 + $0x50] sm:$0xff] %vm271, %v265
    %283 = vst.msk [vmem:[#allocation2 + $0x58] sm:$0xff] %vm271, %v266
    %284 = vst.msk [vmem:[#allocation2 + $0x60] sm:$0xff] %vm271, %v267
    %285 = vst.msk [vmem:[#allocation2 + $0x68] sm:$0xff] %vm271, %v268
    %286 = vst.msk [vmem:[#allocation2 + $0x70] sm:$0xff] %vm271, %v269
    %287 = vst.msk [vmem:[#allocation2 + $0x78] sm:$0xff] %vm271, %v270
    %v288 = vld [vmem:[#allocation2] sm:$0x3f]
    %v289 = vld [vmem:[#allocation2 + $0x8] sm:$0x3f]
    %v290 = vld [vmem:[#allocation2 + $0x10] sm:$0x3f]
    %v292 = vrot.slane %v289, 2
    %v295 = vrot.slane %v290, 4
    %vm297 = vcmask 1045504
    %v298 = vsel %vm297, %v288, %v292
    %vm299 = vcmask 1043456
    %v300 = vsel %vm299, %v292, %v295
    %v301 = vld [vmem:[#allocation2 + $0x20] sm:$0x3f]
    %v302 = vld [vmem:[#allocation2 + $0x28] sm:$0x3f]
    %v303 = vld [vmem:[#allocation2 + $0x30] sm:$0x3f]
    %v305 = vrot.slane %v302, 2
    %v308 = vrot.slane %v303, 4
    %v310 = vsel %vm297, %v301, %v305
    %v311 = vsel %vm299, %v305, %v308
    %v312 = vld [vmem:[#allocation2 + $0x2] sm:$0x3f]
    %v313 = vld [vmem:[#allocation2 + $0xa] sm:$0x3f]
    %v314 = vld [vmem:[#allocation2 + $0x12] sm:$0x3f]
    %v316 = vrot.slane %v313, 2
    %v319 = vrot.slane %v314, 4
    %v321 = vsel %vm297, %v312, %v316
    %v322 = vsel %vm299, %v316, %v319
    %v323 = vld [vmem:[#allocation2 + $0x22] sm:$0x3f]
    %v324 = vld [vmem:[#allocation2 + $0x2a] sm:$0x3f]
    %v325 = vld [vmem:[#allocation2 + $0x32] sm:$0x3f]
    %v327 = vrot.slane %v324, 2
    %v330 = vrot.slane %v325, 4
    %v332 = vsel %vm297, %v323, %v327
    %v333 = vsel %vm299, %v327, %v330
    %v334 = vld [vmem:[#allocation2 + $0x40] sm:$0x3f]
    %v335 = vld [vmem:[#allocation2 + $0x48] sm:$0x3f]
    %v336 = vld [vmem:[#allocation2 + $0x50] sm:$0x3f]
    %v338 = vrot.slane %v335, 2
    %v341 = vrot.slane %v336, 4
    %v343 = vsel %vm297, %v334, %v338
    %v344 = vsel %vm299, %v338, %v341
    %v345 = vld [vmem:[#allocation2 + $0x60] sm:$0x3f]
    %v346 = vld [vmem:[#allocation2 + $0x68] sm:$0x3f]
    %v347 = vld [vmem:[#allocation2 + $0x70] sm:$0x3f]
    %v349 = vrot.slane %v346, 2
    %v352 = vrot.slane %v347, 4
    %v354 = vsel %vm297, %v345, %v349
    %v355 = vsel %vm299, %v349, %v352
    %v356 = vld [vmem:[#allocation2 + $0x42] sm:$0x3f]
    %v357 = vld [vmem:[#allocation2 + $0x4a] sm:$0x3f]
    %v358 = vld [vmem:[#allocation2 + $0x52] sm:$0x3f]
    %v360 = vrot.slane %v357, 2
    %v363 = vrot.slane %v358, 4
    %v365 = vsel %vm297, %v356, %v360
    %v366 = vsel %vm299, %v360, %v363
    %v367 = vld [vmem:[#allocation2 + $0x62] sm:$0x3f]
    %v368 = vld [vmem:[#allocation2 + $0x6a] sm:$0x3f]
    %v369 = vld [vmem:[#allocation2 + $0x72] sm:$0x3f]
    %v371 = vrot.slane %v368, 2
    %v374 = vrot.slane %v369, 4
    %v376 = vsel %vm297, %v367, %v371
    %v377 = vsel %vm299, %v371, %v374
    %v378 = vld [vmem:[#allocation2 + $0x18] sm:$0x3f]
    %v379 = vrot.slane %v290, 2
    %v382 = vrot.slane %v378, 4
    %v384 = vsel %vm297, %v289, %v379
    %v385 = vsel %vm299, %v379, %v382
    %v386 = vld [vmem:[#allocation2 + $0x38] sm:$0x3f]
    %v387 = vrot.slane %v303, 2
    %v390 = vrot.slane %v386, 4
    %v392 = vsel %vm297, %v302, %v387
    %v393 = vsel %vm299, %v387, %v390
    %v394 = vld [vmem:[#allocation2 + $0x1a] sm:$0x3f]
    %v395 = vrot.slane %v314, 2
    %v398 = vrot.slane %v394, 4
    %v400 = vsel %vm297, %v313, %v395
    %v401 = vsel %vm299, %v395, %v398
    %v402 = vld [vmem:[#allocation2 + $0x3a] sm:$0x3f]
    %v403 = vrot.slane %v325, 2
    %v406 = vrot.slane %v402, 4
    %v408 = vsel %vm297, %v324, %v403
    %v409 = vsel %vm299, %v403, %v406
    %v410 = vld [vmem:[#allocation2 + $0x58] sm:$0x3f]
    %v411 = vrot.slane %v336, 2
    %v414 = vrot.slane %v410, 4
    %v416 = vsel %vm297, %v335, %v411
    %v417 = vsel %vm299, %v411, %v414
    %v418 = vld [vmem:[#allocation2 + $0x78] sm:$0x3f]
    %v419 = vrot.slane %v347, 2
    %v422 = vrot.slane %v418, 4
    %v424 = vsel %vm297, %v346, %v419
    %v425 = vsel %vm299, %v419, %v422
    %v426 = vld [vmem:[#allocation2 + $0x5a] sm:$0x3f]
    %v427 = vrot.slane %v358, 2
    %v430 = vrot.slane %v426, 4
    %v432 = vsel %vm297, %v357, %v427
    %v433 = vsel %vm299, %v427, %v430
    %v434 = vld [vmem:[#allocation2 + $0x7a] sm:$0x3f]
    %v435 = vrot.slane %v369, 2
    %v438 = vrot.slane %v434, 4
    %v440 = vsel %vm297, %v368, %v435
    %v441 = vsel %vm299, %v435, %v438
    %444 = vrot.lane.b32.xlu0 %v310, 32
    %v445 = vpop.permute.xlu0 %444
    %446 = vrot.lane.b32.xlu0 %v311, 32
    %v447 = vpop.permute.xlu0 %446
    %448 = vrot.lane.b32.xlu0 %v308, 32
    %v449 = vpop.permute.xlu0 %448
    %455 = vrot.lane.b32.xlu0 %v321, 64
    %v456 = vpop.permute.xlu0 %455
    %457 = vrot.lane.b32.xlu0 %v322, 64
    %v458 = vpop.permute.xlu0 %457
    %459 = vrot.lane.b32.xlu0 %v319, 64
    %v460 = vpop.permute.xlu0 %459
    %466 = vrot.lane.b32.xlu0 %v332, 96
    %v467 = vpop.permute.xlu0 %466
    %468 = vrot.lane.b32.xlu0 %v333, 96
    %v469 = vpop.permute.xlu0 %468
    %470 = vrot.lane.b32.xlu0 %v330, 96
    %v471 = vpop.permute.xlu0 %470
    %477 = vrot.lane.b32.xlu0 %v354, 32
    %v478 = vpop.permute.xlu0 %477
    %479 = vrot.lane.b32.xlu0 %v355, 32
    %v480 = vpop.permute.xlu0 %479
    %481 = vrot.lane.b32.xlu0 %v352, 32
    %v482 = vpop.permute.xlu0 %481
    %488 = vrot.lane.b32.xlu0 %v365, 64
    %v489 = vpop.permute.xlu0 %488
    %490 = vrot.lane.b32.xlu0 %v366, 64
    %v491 = vpop.permute.xlu0 %490
    %492 = vrot.lane.b32.xlu0 %v363, 64
    %v493 = vpop.permute.xlu0 %492
    %499 = vrot.lane.b32.xlu0 %v376, 96
    %v500 = vpop.permute.xlu0 %499
    %501 = vrot.lane.b32.xlu0 %v377, 96
    %v502 = vpop.permute.xlu0 %501
    %503 = vrot.lane.b32.xlu0 %v374, 96
    %v504 = vpop.permute.xlu0 %503
    %510 = vrot.lane.b32.xlu0 %v392, 32
    %v511 = vpop.permute.xlu0 %510
    %512 = vrot.lane.b32.xlu0 %v393, 32
    %v513 = vpop.permute.xlu0 %512
    %514 = vrot.lane.b32.xlu0 %v390, 32
    %v515 = vpop.permute.xlu0 %514
    %521 = vrot.lane.b32.xlu0 %v400, 64
    %v522 = vpop.permute.xlu0 %521
    %523 = vrot.lane.b32.xlu0 %v401, 64
    %v524 = vpop.permute.xlu0 %523
    %525 = vrot.lane.b32.xlu0 %v398, 64
    %v526 = vpop.permute.xlu0 %525
    %532 = vrot.lane.b32.xlu0 %v408, 96
    %v533 = vpop.permute.xlu0 %532
    %534 = vrot.lane.b32.xlu0 %v409, 96
    %v535 = vpop.permute.xlu0 %534
    %536 = vrot.lane.b32.xlu0 %v406, 96
    %v537 = vpop.permute.xlu0 %536
    %543 = vrot.lane.b32.xlu0 %v424, 32
    %v544 = vpop.permute.xlu0 %543
    %545 = vrot.lane.b32.xlu0 %v425, 32
    %v546 = vpop.permute.xlu0 %545
    %547 = vrot.lane.b32.xlu0 %v422, 32
    %v548 = vpop.permute.xlu0 %547
    %554 = vrot.lane.b32.xlu0 %v432, 64
    %v555 = vpop.permute.xlu0 %554
    %556 = vrot.lane.b32.xlu0 %v433, 64
    %v557 = vpop.permute.xlu0 %556
    %558 = vrot.lane.b32.xlu0 %v430, 64
    %v559 = vpop.permute.xlu0 %558
    %565 = vrot.lane.b32.xlu0 %v440, 96
    %v566 = vpop.permute.xlu0 %565
    %567 = vrot.lane.b32.xlu0 %v441, 96
    %v568 = vpop.permute.xlu0 %567
    %569 = vrot.lane.b32.xlu0 %v438, 96
    %v570 = vpop.permute.xlu0 %569
    %v574 = vsel %vm271, %v298, %v445
    %v575 = vsel %vm271, %v300, %v447
    %v576 = vsel %vm271, %v295, %v449
    %vm577 = vcmask 523264
    %v578 = vsel %vm577, %v574, %v456
    %v579 = vsel %vm577, %v575, %v458
    %v580 = vsel %vm577, %v576, %v460
    %vm581 = vcmask 785408
    %v582 = vsel %vm581, %v578, %v467
    %v583 = vsel %vm581, %v579, %v469
    %v584 = vsel %vm581, %v580, %v471
    %v585 = vsel %vm271, %v343, %v478
    %v586 = vsel %vm271, %v344, %v480
    %v587 = vsel %vm271, %v341, %v482
    %v588 = vsel %vm577, %v585, %v489
    %v589 = vsel %vm577, %v586, %v491
    %v590 = vsel %vm577, %v587, %v493
    %v591 = vsel %vm581, %v588, %v500
    %v592 = vsel %vm581, %v589, %v502
    %v593 = vsel %vm581, %v590, %v504
    %v594 = vsel %vm271, %v384, %v511
    %v595 = vsel %vm271, %v385, %v513
    %v596 = vsel %vm271, %v382, %v515
    %v597 = vsel %vm577, %v594, %v522
    %v598 = vsel %vm577, %v595, %v524
    %v599 = vsel %vm577, %v596, %v526
    %v600 = vsel %vm581, %v597, %v533
    %v601 = vsel %vm581, %v598, %v535
    %v602 = vsel %vm581, %v599, %v537
    %v603 = vsel %vm271, %v416, %v544
    %v604 = vsel %vm271, %v417, %v546
    %v605 = vsel %vm271, %v414, %v548
    %v606 = vsel %vm577, %v603, %v555
    %v607 = vsel %vm577, %v604, %v557
    %v608 = vsel %vm577, %v605, %v559
    %v609 = vsel %vm581, %v606, %v566
    %v610 = vsel %vm581, %v607, %v568
    %v611 = vsel %vm581, %v608, %v570
    %v612 = vld [vmem:[%s3] sm:$0xff]
    %v613 = vld [vmem:[%s3 + $0x8] sm:$0xff]
    %v614 = vld [vmem:[%s3 + $0x10] sm:$0xff]
    %v615 = vld [vmem:[%s3 + $0x18] sm:$0xff]
    %v616 = vld [vmem:[%s3 + $0x20] sm:$0xff]
    %v617 = vld [vmem:[%s3 + $0x28] sm:$0xff]
    %v618 = vld [vmem:[%s3 + $0x30] sm:$0xff]
    %v619 = vld [vmem:[%s3 + $0x38] sm:$0xff]
    %v620 = vld [vmem:[%s3 + $0x40] sm:$0xff]
    %v621 = vld [vmem:[%s3 + $0x48] sm:$0xff]
    %v622 = vld [vmem:[%s3 + $0x50] sm:$0xff]
    %v623 = vld [vmem:[%s3 + $0x58] sm:$0xff]
    %v624 = vld [vmem:[%s3 + $0x60] sm:$0xff]
    %v625 = vld [vmem:[%s3 + $0x68] sm:$0xff]
    %v626 = vld [vmem:[%s3 + $0x70] sm:$0xff]
    %v627 = vld [vmem:[%s3 + $0x78] sm:$0xff]
    %v628 = vld [vmem:[%s3 + $0x80] sm:$0xff]
    %v629 = vld [vmem:[%s3 + $0x88] sm:$0xff]
    %v630 = vld [vmem:[%s3 + $0x90] sm:$0xff]
    %v631 = vld [vmem:[%s3 + $0x98] sm:$0xff]
    %v632 = vld [vmem:[%s3 + $0xa0] sm:$0xff]
    %v633 = vld [vmem:[%s3 + $0xa8] sm:$0xff]
    %v634 = vld [vmem:[%s3 + $0xb0] sm:$0xff]
    %v635 = vld [vmem:[%s3 + $0xb8] sm:$0xff]
    %v636 = vld [vmem:[%s3 + $0xc0] sm:$0xff]
    %v637 = vld [vmem:[%s3 + $0xc8] sm:$0xff]
    %v638 = vld [vmem:[%s3 + $0xd0] sm:$0xff]
    %v639 = vld [vmem:[%s3 + $0xd8] sm:$0xff]
    %v640 = vld [vmem:[%s3 + $0xe0] sm:$0xff]
    %v641 = vld [vmem:[%s3 + $0xe8] sm:$0xff]
    %v642 = vld [vmem:[%s3 + $0xf0] sm:$0xff]
    %v643 = vld [vmem:[%s3 + $0xf8] sm:$0xff]
    %v644 = vld [vmem:[%s3 + $0x100] sm:$0xff]
    %v645 = vld [vmem:[%s3 + $0x108] sm:$0xff]
    %v646 = vld [vmem:[%s3 + $0x110] sm:$0xff]
    %v647 = vld [vmem:[%s3 + $0x118] sm:$0xff]
    %v648 = vld [vmem:[%s3 + $0x120] sm:$0xff]
    %v649 = vld [vmem:[%s3 + $0x128] sm:$0xff]
    %v650 = vld [vmem:[%s3 + $0x130] sm:$0xff]
    %v651 = vld [vmem:[%s3 + $0x138] sm:$0xff]
    %v652 = vld [vmem:[%s3 + $0x140] sm:$0xff]
    %v653 = vld [vmem:[%s3 + $0x148] sm:$0xff]
    %v654 = vld [vmem:[%s3 + $0x150] sm:$0xff]
    %v655 = vld [vmem:[%s3 + $0x158] sm:$0xff]
    %v656 = vld [vmem:[%s3 + $0x160] sm:$0xff]
    %v657 = vld [vmem:[%s3 + $0x168] sm:$0xff]
    %v658 = vld [vmem:[%s3 + $0x170] sm:$0xff]
    %v659 = vld [vmem:[%s3 + $0x178] sm:$0xff]
    %v660 = vld [vmem:[%s3 + $0x180] sm:$0xff]
    %v661 = vld [vmem:[%s3 + $0x188] sm:$0xff]
    %v662 = vld [vmem:[%s3 + $0x190] sm:$0xff]
    %v663 = vld [vmem:[%s3 + $0x198] sm:$0xff]
    %v664 = vld [vmem:[%s3 + $0x1a0] sm:$0xff]
    %v665 = vld [vmem:[%s3 + $0x1a8] sm:$0xff]
    %v666 = vld [vmem:[%s3 + $0x1b0] sm:$0xff]
    %v667 = vld [vmem:[%s3 + $0x1b8] sm:$0xff]
    %v668 = vld [vmem:[%s3 + $0x1c0] sm:$0xff]
    %v669 = vld [vmem:[%s3 + $0x1c8] sm:$0xff]
    %v670 = vld [vmem:[%s3 + $0x1d0] sm:$0xff]
    %v671 = vld [vmem:[%s3 + $0x1d8] sm:$0xff]
    %v672 = vld [vmem:[%s3 + $0x1e0] sm:$0xff]
    %v673 = vld [vmem:[%s3 + $0x1e8] sm:$0xff]
    %v674 = vld [vmem:[%s3 + $0x1f0] sm:$0xff]
    %v675 = vld [vmem:[%s3 + $0x1f8] sm:$0xff]
    %v676 = vld [vmem:[%s4] sm:$0x1]
    %v678 = vlaneseq
    %v679 = vshrl.u32 %v678, 7
    %v680 = vsub.s32 0, %v679
    %v681 = vrot.slane %v676, %v680
    %683 = vmatprep.subr.mxu0 0.0
    %684 = vmatpush1.msra.mxu0 %v612
    %685 = vmatprep.subr.mxu0 0.0
    %686 = vmatpush1.msra.mxu0 %v613
    %687 = vmatprep.subr.mxu0 0.0
    %688 = vmatpush1.msra.mxu0 %v614
    %689 = vmatprep.subr.mxu0 0.0
    %690 = vmatpush1.msra.mxu0 %v615
    %691 = vmatprep.subr.mxu0 0.0
    %692 = vmatpush1.msra.mxu0 %v616
    %693 = vmatprep.subr.mxu0 0.0
    %694 = vmatpush1.msra.mxu0 %v617
    %695 = vmatprep.subr.mxu0 0.0
    %696 = vmatpush1.msra.mxu0 %v618
    %697 = vmatprep.subr.mxu0 0.0
    %698 = vmatpush1.msra.mxu0 %v619
    %699 = vmatprep.subr.mxu0 0.0
    %700 = vmatpush1.msra.mxu0 %v620
    %701 = vmatprep.subr.mxu0 0.0
    %702 = vmatpush1.msra.mxu0 %v621
    %703 = vmatprep.subr.mxu0 0.0
    %704 = vmatpush1.msra.mxu0 %v622
    %705 = vmatprep.subr.mxu0 0.0
    %706 = vmatpush1.msra.mxu0 %v623
    %707 = vmatprep.subr.mxu0 0.0
    %708 = vmatpush1.msra.mxu0 %v624
    %709 = vmatprep.subr.mxu0 0.0
    %710 = vmatpush1.msra.mxu0 %v625
    %711 = vmatprep.subr.mxu0 0.0
    %712 = vmatpush1.msra.mxu0 %v626
    %713 = vmatprep.subr.mxu0 0.0
    %714 = vmatpush1.msra.mxu0 %v627
    %715 = vmatprep.subr.mxu0 0.0
    %716 = vmatpush1.msra.mxu0 %v628
    %717 = vmatprep.subr.mxu0 0.0
    %718 = vmatpush1.msra.mxu0 %v629
    %719 = vmatprep.subr.mxu0 0.0
    %720 = vmatpush1.msra.mxu0 %v630
    %721 = vmatprep.subr.mxu0 0.0
    %722 = vmatpush1.msra.mxu0 %v631
    %723 = vmatprep.subr.mxu0 0.0
    %724 = vmatpush1.msra.mxu0 %v632
    %725 = vmatprep.subr.mxu0 0.0
    %726 = vmatpush1.msra.mxu0 %v633
    %727 = vmatprep.subr.mxu0 0.0
    %728 = vmatpush1.msra.mxu0 %v634
    %729 = vmatprep.subr.mxu0 0.0
    %730 = vmatpush1.msra.mxu0 %v635
    %731 = vmatprep.subr.mxu0 0.0
    %732 = vmatpush1.msra.mxu0 %v636
    %733 = vmatprep.subr.mxu0 0.0
    %734 = vmatpush1.msra.mxu0 %v637
    %735 = vmatprep.subr.mxu0 0.0
    %736 = vmatpush1.msra.mxu0 %v638
    %737 = vmatprep.subr.mxu0 0.0
    %738 = vmatpush1.msra.mxu0 %v639
    %739 = vmatprep.subr.mxu0 0.0
    %740 = vmatpush1.msra.mxu0 %v640
    %741 = vmatprep.subr.mxu0 0.0
    %742 = vmatpush1.msra.mxu0 %v641
    %743 = vmatprep.subr.mxu0 0.0
    %744 = vmatpush1.msra.mxu0 %v642
    %745 = vmatprep.subr.mxu0 0.0
    %746 = vmatpush1.msra.mxu0 %v643
    %747 = vmatprep.mubr.f32.mxu0 %v591
    %748 = vmatmul.mubr.f32.gmra.mrb[0].mxu0 %v582
    %v749 = vpop.f32.mrb[0].mxu0
    %v750 = vadd.f32 %v681, %v749
    %v751 = vpop.f32.mrb[0].mxu0
    %752 = vmatprep.mubr.f32.mxu0 %v592
    %753 = vmatmul.mubr.f32.gmra.mrb[0].mxu0 %v583
    %v754 = vpop.f32.mrb[0].mxu0
    %v755 = vadd.f32 %v681, %v754
    %v756 = vpop.f32.mrb[0].mxu0
    %757 = vmatprep.mubr.f32.mxu0 %v593
    %758 = vmatmul.mubr.f32.gmra.mrb[0].mxu0 %v584
    %v759 = vpop.f32.mrb[0].mxu0
    %v760 = vadd.f32 %v681, %v759
    %v761 = vpop.f32.mrb[0].mxu0
    %762 = vdwg.mxu0
    %763 = vmatprep.subr.mxu0 0.0
    %764 = vmatpush1.msra.mxu0 %v644
    %765 = vmatprep.subr.mxu0 0.0
    %766 = vmatpush1.msra.mxu0 %v645
    %767 = vmatprep.subr.mxu0 0.0
    %768 = vmatpush1.msra.mxu0 %v646
    %769 = vmatprep.subr.mxu0 0.0
    %770 = vmatpush1.msra.mxu0 %v647
    %771 = vmatprep.subr.mxu0 0.0
    %772 = vmatpush1.msra.mxu0 %v648
    %773 = vmatprep.subr.mxu0 0.0
    %774 = vmatpush1.msra.mxu0 %v649
    %775 = vmatprep.subr.mxu0 0.0
    %776 = vmatpush1.msra.mxu0 %v650
    %777 = vmatprep.subr.mxu0 0.0
    %778 = vmatpush1.msra.mxu0 %v651
    %779 = vmatprep.subr.mxu0 0.0
    %780 = vmatpush1.msra.mxu0 %v652
    %781 = vmatprep.subr.mxu0 0.0
    %782 = vmatpush1.msra.mxu0 %v653
    %783 = vmatprep.subr.mxu0 0.0
    %784 = vmatpush1.msra.mxu0 %v654
    %785 = vmatprep.subr.mxu0 0.0
    %786 = vmatpush1.msra.mxu0 %v655
    %787 = vmatprep.subr.mxu0 0.0
    %788 = vmatpush1.msra.mxu0 %v656
    %789 = vmatprep.subr.mxu0 0.0
    %790 = vmatpush1.msra.mxu0 %v657
    %791 = vmatprep.subr.mxu0 0.0
    %792 = vmatpush1.msra.mxu0 %v658
    %793 = vmatprep.subr.mxu0 0.0
    %794 = vmatpush1.msra.mxu0 %v659
    %795 = vmatprep.subr.mxu0 0.0
    %796 = vmatpush1.msra.mxu0 %v660
    %797 = vmatprep.subr.mxu0 0.0
    %798 = vmatpush1.msra.mxu0 %v661
    %799 = vmatprep.subr.mxu0 0.0
    %800 = vmatpush1.msra.mxu0 %v662
    %801 = vmatprep.subr.mxu0 0.0
    %802 = vmatpush1.msra.mxu0 %v663
    %803 = vmatprep.subr.mxu0 0.0
    %804 = vmatpush1.msra.mxu0 %v664
    %805 = vmatprep.subr.mxu0 0.0
    %806 = vmatpush1.msra.mxu0 %v665
    %807 = vmatprep.subr.mxu0 0.0
    %808 = vmatpush1.msra.mxu0 %v666
    %809 = vmatprep.subr.mxu0 0.0
    %810 = vmatpush1.msra.mxu0 %v667
    %811 = vmatprep.subr.mxu0 0.0
    %812 = vmatpush1.msra.mxu0 %v668
    %813 = vmatprep.subr.mxu0 0.0
    %814 = vmatpush1.msra.mxu0 %v669
    %815 = vmatprep.subr.mxu0 0.0
    %816 = vmatpush1.msra.mxu0 %v670
    %817 = vmatprep.subr.mxu0 0.0
    %818 = vmatpush1.msra.mxu0 %v671
    %819 = vmatprep.subr.mxu0 0.0
    %820 = vmatpush1.msra.mxu0 %v672
    %821 = vmatprep.subr.mxu0 0.0
    %822 = vmatpush1.msra.mxu0 %v673
    %823 = vmatprep.subr.mxu0 0.0
    %824 = vmatpush1.msra.mxu0 %v674
    %825 = vmatprep.subr.mxu0 0.0
    %826 = vmatpush1.msra.mxu0 %v675
    %827 = vmatprep.mubr.f32.mxu0 %v609
    %828 = vmatmul.mubr.f32.gmra.mrb[0].mxu0 %v600
    %v829 = vpop.f32.mrb[0].mxu0
    %v830 = vadd.f32 %v750, %v829
    %v831 = vpop.f32.mrb[0].mxu0
    %832 = vmatprep.mubr.f32.mxu0 %v610
    %833 = vmatmul.mubr.f32.gmra.mrb[0].mxu0 %v601
    %v834 = vpop.f32.mrb[0].mxu0
    %v835 = vadd.f32 %v755, %v834
    %v836 = vpop.f32.mrb[0].mxu0
    %837 = vmatprep.mubr.f32.mxu0 %v611
    %838 = vmatmul.mubr.f32.gmra.mrb[0].mxu0 %v602
    %v839 = vpop.f32.mrb[0].mxu0
    %v840 = vadd.f32 %v760, %v839
    %v841 = vpop.f32.mrb[0].mxu0
    %842 = vdwg.mxu0
    %v843 = vmax.f32 %v830, 0.0
    %v844 = vmax.f32 %v835, 0.0
    %v845 = vmax.f32 %v840, 0.0
    %846 = vst.msk [vmem:[#allocation3] sm:$0xff] %vm577, %v843
    %847 = vst.msk [vmem:[#allocation3 + $0x8] sm:$0xff] %vm577, %v844
    %vm848 = vcmask 517120
    %849 = vst.msk [vmem:[#allocation3 + $0x10] sm:$0x3] %vm848, %v845
    %v850 = vld [vmem:[#allocation3] sm:$0x3]
    %v851 = vld [vmem:[#allocation3 + $0x2] sm:$0x3]
    %v852 = vld [vmem:[#allocation3 + $0x4] sm:$0x3]
    %v853 = vld [vmem:[#allocation3 + $0x6] sm:$0x3]
    %v854 = vld [vmem:[#allocation3 + $0x8] sm:$0x3]
    %v855 = vld [vmem:[#allocation3 + $0xa] sm:$0x3]
    %v856 = vld [vmem:[#allocation3 + $0xc] sm:$0x3]
    %v857 = vld [vmem:[#allocation3 + $0xe] sm:$0x3]
    %v858 = vld [vmem:[#allocation3 + $0x10] sm:$0x3]
    %860 = vrot.lane.b32.xlu0 %v851, 64
    %v861 = vpop.permute.xlu0 %860
    %864 = vrot.lane.b32.xlu0 %v853, 64
    %v865 = vpop.permute.xlu0 %864
    %868 = vrot.lane.b32.xlu0 %v855, 64
    %v869 = vpop.permute.xlu0 %868
    %872 = vrot.lane.b32.xlu0 %v857, 64
    %v873 = vpop.permute.xlu0 %872
    %v875 = vsel %vm577, %v850, %v861
    %v876 = vsel %vm577, %v852, %v865
    %v877 = vsel %vm577, %v854, %v869
    %v878 = vsel %vm577, %v856, %v873
    %v879 = vld [vmem:[%s5] sm:$0xff]
    %v880 = vld [vmem:[%s5 + $0x8] sm:$0xff]
    %v881 = vld [vmem:[%s5 + $0x10] sm:$0xff]
    %v882 = vld [vmem:[%s5 + $0x18] sm:$0xff]
    %v883 = vld [vmem:[%s5 + $0x20] sm:$0xff]
    %v884 = vld [vmem:[%s5 + $0x28] sm:$0xff]
    %v885 = vld [vmem:[%s5 + $0x30] sm:$0xff]
    %v886 = vld [vmem:[%s5 + $0x38] sm:$0xff]
    %v887 = vld [vmem:[%s5 + $0x40] sm:$0xff]
    %v888 = vld [vmem:[%s5 + $0x48] sm:$0xff]
    %v889 = vld [vmem:[%s5 + $0x50] sm:$0xff]
    %v890 = vld [vmem:[%s5 + $0x58] sm:$0xff]
    %v891 = vld [vmem:[%s5 + $0x60] sm:$0xff]
    %v892 = vld [vmem:[%s5 + $0x68] sm:$0xff]
    %v893 = vld [vmem:[%s5 + $0x70] sm:$0xff]
    %v894 = vld [vmem:[%s5 + $0x78] sm:$0xff]
    %v895 = vld [vmem:[%s5 + $0x80] sm:$0xff]
    %v896 = vld [vmem:[%s5 + $0x88] sm:$0xff]
    %v897 = vld [vmem:[%s5 + $0x90] sm:$0xff]
    %v898 = vld [vmem:[%s5 + $0x98] sm:$0xff]
    %v899 = vld [vmem:[%s5 + $0xa0] sm:$0xff]
    %v900 = vld [vmem:[%s5 + $0xa8] sm:$0xff]
    %v901 = vld [vmem:[%s5 + $0xb0] sm:$0xff]
    %v902 = vld [vmem:[%s5 + $0xb8] sm:$0xff]
    %v903 = vld [vmem:[%s5 + $0xc0] sm:$0xff]
    %v904 = vld [vmem:[%s5 + $0xc8] sm:$0xff]
    %v905 = vld [vmem:[%s5 + $0xd0] sm:$0xff]
    %v906 = vld [vmem:[%s5 + $0xd8] sm:$0xff]
    %v907 = vld [vmem:[%s5 + $0xe0] sm:$0xff]
    %v908 = vld [vmem:[%s5 + $0xe8] sm:$0xff]
    %v909 = vld [vmem:[%s5 + $0xf0] sm:$0xff]
    %v910 = vld [vmem:[%s5 + $0xf8] sm:$0xff]
    %v911 = vld [vmem:[%s5 + $0x100] sm:$0xff]
    %v912 = vld [vmem:[%s5 + $0x108] sm:$0xff]
    %v913 = vld [vmem:[%s5 + $0x110] sm:$0xff]
    %v914 = vld [vmem:[%s5 + $0x118] sm:$0xff]
    %v915 = vld [vmem:[%s5 + $0x120] sm:$0xff]
    %v916 = vld [vmem:[%s5 + $0x128] sm:$0xff]
    %v917 = vld [vmem:[%s5 + $0x130] sm:$0xff]
    %v918 = vld [vmem:[%s5 + $0x138] sm:$0xff]
    %v919 = vld [vmem:[%s5 + $0x140] sm:$0xff]
    %v920 = vld [vmem:[%s5 + $0x148] sm:$0xff]
    %v921 = vld [vmem:[%s5 + $0x150] sm:$0xff]
    %v922 = vld [vmem:[%s5 + $0x158] sm:$0xff]
    %v923 = vld [vmem:[%s5 + $0x160] sm:$0xff]
    %v924 = vld [vmem:[%s5 + $0x168] sm:$0xff]
    %v925 = vld [vmem:[%s5 + $0x170] sm:$0xff]
    %v926 = vld [vmem:[%s5 + $0x178] sm:$0xff]
    %v927 = vld [vmem:[%s5 + $0x180] sm:$0xff]
    %v928 = vld [vmem:[%s5 + $0x188] sm:$0xff]
    %v929 = vld [vmem:[%s5 + $0x190] sm:$0xff]
    %v930 = vld [vmem:[%s5 + $0x198] sm:$0xff]
    %v931 = vld [vmem:[%s5 + $0x1a0] sm:$0xff]
    %v932 = vld [vmem:[%s5 + $0x1a8] sm:$0xff]
    %v933 = vld [vmem:[%s5 + $0x1b0] sm:$0xff]
    %v934 = vld [vmem:[%s5 + $0x1b8] sm:$0xff]
    %v935 = vld [vmem:[%s5 + $0x1c0] sm:$0xff]
    %v936 = vld [vmem:[%s5 + $0x1c8] sm:$0xff]
    %v937 = vld [vmem:[%s5 + $0x1d0] sm:$0xff]
    %v938 = vld [vmem:[%s5 + $0x1d8] sm:$0xff]
    %v939 = vld [vmem:[%s5 + $0x1e0] sm:$0xff]
    %v940 = vld [vmem:[%s5 + $0x1e8] sm:$0xff]
    %v941 = vld [vmem:[%s5 + $0x1f0] sm:$0xff]
    %v942 = vld [vmem:[%s5 + $0x1f8] sm:$0xff]
    %v943 = vld [vmem:[%s5 + $0x200] sm:$0xff]
    %v944 = vld [vmem:[%s5 + $0x208] sm:$0xff]
    %v945 = vld [vmem:[%s5 + $0x210] sm:$0xff]
    %v946 = vld [vmem:[%s5 + $0x218] sm:$0xff]
    %v947 = vld [vmem:[%s5 + $0x220] sm:$0xff]
    %v948 = vld [vmem:[%s5 + $0x228] sm:$0xff]
    %v949 = vld [vmem:[%s5 + $0x230] sm:$0xff]
    %v950 = vld [vmem:[%s5 + $0x238] sm:$0xff]
    %v951 = vld [vmem:[%s6] sm:$0x1]
    %v953 = vlaneseq
    %v954 = vshrl.u32 %v953, 7
    %v955 = vsub.s32 0, %v954
    %v956 = vrot.slane %v951, %v955
    %v959 = vsel %vm577, %v858, 0
    %961 = vmatprep.subr.mxu0 0.0
    %962 = vmatpush1.msra.mxu0 %v879
    %963 = vmatprep.subr.mxu0 0.0
    %964 = vmatpush1.msra.mxu0 %v880
    %965 = vmatprep.subr.mxu0 0.0
    %966 = vmatpush1.msra.mxu0 %v881
    %967 = vmatprep.subr.mxu0 0.0
    %968 = vmatpush1.msra.mxu0 %v882
    %969 = vmatprep.subr.mxu0 0.0
    %970 = vmatpush1.msra.mxu0 %v883
    %971 = vmatprep.subr.mxu0 0.0
    %972 = vmatpush1.msra.mxu0 %v884
    %973 = vmatprep.subr.mxu0 0.0
    %974 = vmatpush1.msra.mxu0 %v885
    %975 = vmatprep.subr.mxu0 0.0
    %976 = vmatpush1.msra.mxu0 %v886
    %977 = vmatprep.subr.mxu0 0.0
    %978 = vmatpush1.msra.mxu0 %v887
    %979 = vmatprep.subr.mxu0 0.0
    %980 = vmatpush1.msra.mxu0 %v888
    %981 = vmatprep.subr.mxu0 0.0
    %982 = vmatpush1.msra.mxu0 %v889
    %983 = vmatprep.subr.mxu0 0.0
    %984 = vmatpush1.msra.mxu0 %v890
    %985 = vmatprep.subr.mxu0 0.0
    %986 = vmatpush1.msra.mxu0 %v891
    %987 = vmatprep.subr.mxu0 0.0
    %988 = vmatpush1.msra.mxu0 %v892
    %989 = vmatprep.subr.mxu0 0.0
    %990 = vmatpush1.msra.mxu0 %v893
    %991 = vmatprep.subr.mxu0 0.0
    %992 = vmatpush1.msra.mxu0 %v894
    %993 = vmatprep.subr.mxu0 0.0
    %994 = vmatpush1.msra.mxu0 %v895
    %995 = vmatprep.subr.mxu0 0.0
    %996 = vmatpush1.msra.mxu0 %v896
    %997 = vmatprep.subr.mxu0 0.0
    %998 = vmatpush1.msra.mxu0 %v897
    %999 = vmatprep.subr.mxu0 0.0
    %1000 = vmatpush1.msra.mxu0 %v898
    %1001 = vmatprep.subr.mxu0 0.0
    %1002 = vmatpush1.msra.mxu0 %v899
    %1003 = vmatprep.subr.mxu0 0.0
    %1004 = vmatpush1.msra.mxu0 %v900
    %1005 = vmatprep.subr.mxu0 0.0
    %1006 = vmatpush1.msra.mxu0 %v901
    %1007 = vmatprep.subr.mxu0 0.0
    %1008 = vmatpush1.msra.mxu0 %v902
    %1009 = vmatprep.subr.mxu0 0.0
    %1010 = vmatpush1.msra.mxu0 %v903
    %1011 = vmatprep.subr.mxu0 0.0
    %1012 = vmatpush1.msra.mxu0 %v904
    %1013 = vmatprep.subr.mxu0 0.0
    %1014 = vmatpush1.msra.mxu0 %v905
    %1015 = vmatprep.subr.mxu0 0.0
    %1016 = vmatpush1.msra.mxu0 %v906
    %1017 = vmatprep.subr.mxu0 0.0
    %1018 = vmatpush1.msra.mxu0 %v907
    %1019 = vmatprep.subr.mxu0 0.0
    %1020 = vmatpush1.msra.mxu0 %v908
    %1021 = vmatprep.subr.mxu0 0.0
    %1022 = vmatpush1.msra.mxu0 %v909
    %1023 = vmatprep.subr.mxu0 0.0
    %1024 = vmatpush1.msra.mxu0 %v910
    %1025 = vmatprep.mubr.f32.mxu0 %v876
    %1026 = vmatmul.mubr.f32.gmra.mrb[0].mxu0 %v875
    %v1027 = vpop.f32.mrb[0].mxu0
    %v1028 = vadd.f32 %v956, %v1027
    %v1029 = vpop.f32.mrb[0].mxu0
    %1030 = vdwg.mxu0
    %1031 = vmatprep.subr.mxu0 0.0
    %1032 = vmatpush1.msra.mxu0 %v911
    %1033 = vmatprep.subr.mxu0 0.0
    %1034 = vmatpush1.msra.mxu0 %v912
    %1035 = vmatprep.subr.mxu0 0.0
    %1036 = vmatpush1.msra.mxu0 %v913
    %1037 = vmatprep.subr.mxu0 0.0
    %1038 = vmatpush1.msra.mxu0 %v914
    %1039 = vmatprep.subr.mxu0 0.0
    %1040 = vmatpush1.msra.mxu0 %v915
    %1041 = vmatprep.subr.mxu0 0.0
    %1042 = vmatpush1.msra.mxu0 %v916
    %1043 = vmatprep.subr.mxu0 0.0
    %1044 = vmatpush1.msra.mxu0 %v917
    %1045 = vmatprep.subr.mxu0 0.0
    %1046 = vmatpush1.msra.mxu0 %v918
    %1047 = vmatprep.subr.mxu0 0.0
    %1048 = vmatpush1.msra.mxu0 %v919
    %1049 = vmatprep.subr.mxu0 0.0
    %1050 = vmatpush1.msra.mxu0 %v920
    %1051 = vmatprep.subr.mxu0 0.0
    %1052 = vmatpush1.msra.mxu0 %v921
    %1053 = vmatprep.subr.mxu0 0.0
    %1054 = vmatpush1.msra.mxu0 %v922
    %1055 = vmatprep.subr.mxu0 0.0
    %1056 = vmatpush1.msra.mxu0 %v923
    %1057 = vmatprep.subr.mxu0 0.0
    %1058 = vmatpush1.msra.mxu0 %v924
    %1059 = vmatprep.subr.mxu0 0.0
    %1060 = vmatpush1.msra.mxu0 %v925
    %1061 = vmatprep.subr.mxu0 0.0
    %1062 = vmatpush1.msra.mxu0 %v926
    %1063 = vmatprep.subr.mxu0 0.0
    %1064 = vmatpush1.msra.mxu0 %v927
    %1065 = vmatprep.subr.mxu0 0.0
    %1066 = vmatpush1.msra.mxu0 %v928
    %1067 = vmatprep.subr.mxu0 0.0
    %1068 = vmatpush1.msra.mxu0 %v929
    %1069 = vmatprep.subr.mxu0 0.0
    %1070 = vmatpush1.msra.mxu0 %v930
    %1071 = vmatprep.subr.mxu0 0.0
    %1072 = vmatpush1.msra.mxu0 %v931
    %1073 = vmatprep.subr.mxu0 0.0
    %1074 = vmatpush1.msra.mxu0 %v932
    %1075 = vmatprep.subr.mxu0 0.0
    %1076 = vmatpush1.msra.mxu0 %v933
    %1077 = vmatprep.subr.mxu0 0.0
    %1078 = vmatpush1.msra.mxu0 %v934
    %1079 = vmatprep.subr.mxu0 0.0
    %1080 = vmatpush1.msra.mxu0 %v935
    %1081 = vmatprep.subr.mxu0 0.0
    %1082 = vmatpush1.msra.mxu0 %v936
    %1083 = vmatprep.subr.mxu0 0.0
    %1084 = vmatpush1.msra.mxu0 %v937
    %1085 = vmatprep.subr.mxu0 0.0
    %1086 = vmatpush1.msra.mxu0 %v938
    %1087 = vmatprep.subr.mxu0 0.0
    %1088 = vmatpush1.msra.mxu0 %v939
    %1089 = vmatprep.subr.mxu0 0.0
    %1090 = vmatpush1.msra.mxu0 %v940
    %1091 = vmatprep.subr.mxu0 0.0
    %1092 = vmatpush1.msra.mxu0 %v941
    %1093 = vmatprep.subr.mxu0 0.0
    %1094 = vmatpush1.msra.mxu0 %v942
    %1095 = vmatprep.mubr.f32.mxu0 %v878
    %1096 = vmatmul.mubr.f32.gmra.mrb[0].mxu0 %v877
    %v1097 = vpop.f32.mrb[0].mxu0
    %v1098 = vadd.f32 %v1028, %v1097
    %v1099 = vpop.f32.mrb[0].mxu0
    %1100 = vdwg.mxu0
    %1101 = vmatprep.subr.mxu0 0.0
    %1102 = vmatpush1.msra.mxu0 %v943
    %1103 = vmatprep.subr.mxu0 0.0
    %1104 = vmatpush1.msra.mxu0 %v944
    %1105 = vmatprep.subr.mxu0 0.0
    %1106 = vmatpush1.msra.mxu0 %v945
    %1107 = vmatprep.subr.mxu0 0.0
    %1108 = vmatpush1.msra.mxu0 %v946
    %1109 = vmatprep.subr.mxu0 0.0
    %1110 = vmatpush1.msra.mxu0 %v947
    %1111 = vmatprep.subr.mxu0 0.0
    %1112 = vmatpush1.msra.mxu0 %v948
    %1113 = vmatprep.subr.mxu0 0.0
    %1114 = vmatpush1.msra.mxu0 %v949
    %1115 = vmatprep.subr.mxu0 0.0
    %1116 = vmatpush1.msra.mxu0 %v950
    %1117 = vmatprep.subr.mxu0 0.0
    %1118 = vmatpush1.msra.mxu0 0.0
    %1119 = vmatprep.subr.mxu0 0.0
    %1120 = vmatpush1.msra.mxu0 0.0
    %1121 = vmatprep.subr.mxu0 0.0
    %1122 = vmatpush1.msra.mxu0 0.0
    %1123 = vmatprep.subr.mxu0 0.0
    %1124 = vmatpush1.msra.mxu0 0.0
    %1125 = vmatprep.subr.mxu0 0.0
    %1126 = vmatpush1.msra.mxu0 0.0
    %1127 = vmatprep.subr.mxu0 0.0
    %1128 = vmatpush1.msra.mxu0 0.0
    %1129 = vmatprep.subr.mxu0 0.0
    %1130 = vmatpush1.msra.mxu0 0.0
    %1131 = vmatprep.subr.mxu0 0.0
    %1132 = vmatpush1.msra.mxu0 0.0
    %1133 = vmatprep.subr.mxu0 0.0
    %1134 = vmatpush1.msra.mxu0 0.0
    %1135 = vmatprep.subr.mxu0 0.0
    %1136 = vmatpush1.msra.mxu0 0.0
    %1137 = vmatprep.subr.mxu0 0.0
    %1138 = vmatpush1.msra.mxu0 0.0
    %1139 = vmatprep.subr.mxu0 0.0
    %1140 = vmatpush1.msra.mxu0 0.0
    %1141 = vmatprep.subr.mxu0 0.0
    %1142 = vmatpush1.msra.mxu0 0.0
    %1143 = vmatprep.subr.mxu0 0.0
    %1144 = vmatpush1.msra.mxu0 0.0
    %1145 = vmatprep.subr.mxu0 0.0
    %1146 = vmatpush1.msra.mxu0 0.0
    %1147 = vmatprep.subr.mxu0 0.0
    %1148 = vmatpush1.msra.mxu0 0.0
    %1149 = vmatprep.subr.mxu0 0.0
    %1150 = vmatpush1.msra.mxu0 0.0
    %1151 = vmatprep.subr.mxu0 0.0
    %1152 = vmatpush1.msra.mxu0 0.0
    %1153 = vmatprep.subr.mxu0 0.0
    %1154 = vmatpush1.msra.mxu0 0.0
    %1155 = vmatprep.subr.mxu0 0.0
    %1156 = vmatpush1.msra.mxu0 0.0
    %1157 = vmatprep.subr.mxu0 0.0
    %1158 = vmatpush1.msra.mxu0 0.0
    %1159 = vmatprep.subr.mxu0 0.0
    %1160 = vmatpush1.msra.mxu0 0.0
    %1161 = vmatprep.subr.mxu0 0.0
    %1162 = vmatpush1.msra.mxu0 0.0
    %1163 = vmatprep.subr.mxu0 0.0
    %1164 = vmatpush1.msra.mxu0 0.0
    %1165 = vmatprep.mubr.f32.mxu0 0.0
    %1166 = vmatmul.mubr.f32.gmra.mrb[0].mxu0 %v959
    %v1167 = vpop.f32.mrb[0].mxu0
    %v1168 = vadd.f32 %v1098, %v1167
    %v1169 = vpop.f32.mrb[0].mxu0
    %1170 = vdwg.mxu0
    %v1171 = vmax.f32 %v1168, 0.0
    %v1172 = vld [vmem:[%s7] sm:$0xff]
    %v1173 = vld [vmem:[%s7 + $0x8] sm:$0xff]
    %v1174 = vld [vmem:[%s7 + $0x10] sm:$0xff]
    %v1175 = vld [vmem:[%s7 + $0x18] sm:$0xff]
    %v1176 = vld [vmem:[%s7 + $0x20] sm:$0xff]
    %v1177 = vld [vmem:[%s7 + $0x28] sm:$0xff]
    %v1178 = vld [vmem:[%s7 + $0x30] sm:$0xff]
    %v1179 = vld [vmem:[%s7 + $0x38] sm:$0xff]
    %v1180 = vld [vmem:[%s7 + $0x40] sm:$0xff]
    %v1181 = vld [vmem:[%s7 + $0x48] sm:$0xff]
    %v1182 = vld [vmem:[%s7 + $0x50] sm:$0xff]
    %v1183 = vld [vmem:[%s7 + $0x58] sm:$0xff]
    %v1184 = vld [vmem:[%s7 + $0x60] sm:$0xff]
    %v1185 = vld [vmem:[%s7 + $0x68] sm:$0xff]
    %v1186 = vld [vmem:[%s7 + $0x70] sm:$0xff]
    %v1187 = vld [vmem:[%s7 + $0x78] sm:$0xff]
    %v1188 = vld [vmem:[%s7 + $0x80] sm:$0xff]
    %v1189 = vld [vmem:[%s7 + $0x88] sm:$0xff]
    %v1190 = vld [vmem:[%s7 + $0x90] sm:$0xff]
    %v1191 = vld [vmem:[%s7 + $0x98] sm:$0xff]
    %v1192 = vld [vmem:[%s7 + $0xa0] sm:$0xff]
    %v1193 = vld [vmem:[%s7 + $0xa8] sm:$0xff]
    %v1194 = vld [vmem:[%s7 + $0xb0] sm:$0xff]
    %v1195 = vld [vmem:[%s7 + $0xb8] sm:$0xff]
    %v1196 = vld [vmem:[%s7 + $0xc0] sm:$0xff]
    %v1197 = vld [vmem:[%s7 + $0xc8] sm:$0xff]
    %v1198 = vld [vmem:[%s7 + $0xd0] sm:$0xff]
    %v1199 = vld [vmem:[%s7 + $0xd8] sm:$0xff]
    %v1200 = vld [vmem:[%s7 + $0xe0] sm:$0xff]
    %v1201 = vld [vmem:[%s7 + $0xe8] sm:$0xff]
    %v1202 = vld [vmem:[%s7 + $0xf0] sm:$0xff]
    %v1203 = vld [vmem:[%s7 + $0xf8] sm:$0xff]
    %v1204 = vld [vmem:[%s8] sm:$0xf]
    %v1206 = vlaneseq
    %v1207 = vshrl.u32 %v1206, 7
    %v1208 = vsub.s32 0, %v1207
    %v1209 = vrot.slane %v1204, %v1208
    %v1210 = vlaneseq
    %v1211 = vshrl.u32 %v1210, 7
    %v1212 = vsub.s32 1, %v1211
    %v1213 = vrot.slane %v1204, %v1212
    %v1214 = vlaneseq
    %v1215 = vshrl.u32 %v1214, 7
    %v1216 = vsub.s32 2, %v1215
    %v1217 = vrot.slane %v1204, %v1216
    %v1218 = vlaneseq
    %v1219 = vshrl.u32 %v1218, 7
    %v1220 = vsub.s32 3, %v1219
    %v1221 = vrot.slane %v1204, %v1220
    %v1227 = vsel %vm577, %v1171, 0
    %1229 = vmatprep.subr.mxu0 %v1173
    %1230 = vmatpush1.msra.mxu0 %v1172
    %1231 = vmatprep.subr.mxu0 %v1177
    %1232 = vmatpush1.msra.mxu0 %v1176
    %1233 = vmatprep.subr.mxu0 %v1181
    %1234 = vmatpush1.msra.mxu0 %v1180
    %1235 = vmatprep.subr.mxu0 %v1185
    %1236 = vmatpush1.msra.mxu0 %v1184
    %1237 = vmatprep.subr.mxu0 %v1189
    %1238 = vmatpush1.msra.mxu0 %v1188
    %1239 = vmatprep.subr.mxu0 %v1193
    %1240 = vmatpush1.msra.mxu0 %v1192
    %1241 = vmatprep.subr.mxu0 %v1197
    %1242 = vmatpush1.msra.mxu0 %v1196
    %1243 = vmatprep.subr.mxu0 %v1201
    %1244 = vmatpush1.msra.mxu0 %v1200
    %1245 = vmatprep.subr.mxu0 0.0
    %1246 = vmatpush1.msra.mxu0 0.0
    %1247 = vmatprep.subr.mxu0 0.0
    %1248 = vmatpush1.msra.mxu0 0.0
    %1249 = vmatprep.subr.mxu0 0.0
    %1250 = vmatpush1.msra.mxu0 0.0
    %1251 = vmatprep.subr.mxu0 0.0
    %1252 = vmatpush1.msra.mxu0 0.0
    %1253 = vmatprep.subr.mxu0 0.0
    %1254 = vmatpush1.msra.mxu0 0.0
    %1255 = vmatprep.subr.mxu0 0.0
    %1256 = vmatpush1.msra.mxu0 0.0
    %1257 = vmatprep.subr.mxu0 0.0
    %1258 = vmatpush1.msra.mxu0 0.0
    %1259 = vmatprep.subr.mxu0 0.0
    %1260 = vmatpush1.msra.mxu0 0.0
    %1261 = vmatprep.subr.mxu0 0.0
    %1262 = vmatpush1.msra.mxu0 0.0
    %1263 = vmatprep.subr.mxu0 0.0
    %1264 = vmatpush1.msra.mxu0 0.0
    %1265 = vmatprep.subr.mxu0 0.0
    %1266 = vmatpush1.msra.mxu0 0.0
    %1267 = vmatprep.subr.mxu0 0.0
    %1268 = vmatpush1.msra.mxu0 0.0
    %1269 = vmatprep.subr.mxu0 0.0
    %1270 = vmatpush1.msra.mxu0 0.0
    %1271 = vmatprep.subr.mxu0 0.0
    %1272 = vmatpush1.msra.mxu0 0.0
    %1273 = vmatprep.subr.mxu0 0.0
    %1274 = vmatpush1.msra.mxu0 0.0
    %1275 = vmatprep.subr.mxu0 0.0
    %1276 = vmatpush1.msra.mxu0 0.0
    %1277 = vmatprep.subr.mxu0 0.0
    %1278 = vmatpush1.msra.mxu0 0.0
    %1279 = vmatprep.subr.mxu0 0.0
    %1280 = vmatpush1.msra.mxu0 0.0
    %1281 = vmatprep.subr.mxu0 0.0
    %1282 = vmatpush1.msra.mxu0 0.0
    %1283 = vmatprep.subr.mxu0 0.0
    %1284 = vmatpush1.msra.mxu0 0.0
    %1285 = vmatprep.subr.mxu0 0.0
    %1286 = vmatpush1.msra.mxu0 0.0
    %1287 = vmatprep.subr.mxu0 0.0
    %1288 = vmatpush1.msra.mxu0 0.0
    %1289 = vmatprep.subr.mxu0 0.0
    %1290 = vmatpush1.msra.mxu0 0.0
    %1291 = vmatprep.subr.mxu0 0.0
    %1292 = vmatpush1.msra.mxu0 0.0
    %1293 = vmatprep.mubr.f32.mxu0 0.0
    %1294 = vmatmul.mubr.f32.gmra.mrb[0].mxu0 %v1227
    %v1295 = vpop.f32.mrb[0].mxu0
    %v1296 = vadd.f32 %v1209, %v1295
    %v1297 = vpop.f32.mrb[0].mxu0
    %v1298 = vadd.f32 %v1213, %v1297
    %1299 = vdwg.mxu0
    %1300 = vmatprep.subr.mxu0 %v1175
    %1301 = vmatpush1.msra.mxu0 %v1174
    %1302 = vmatprep.subr.mxu0 %v1179
    %1303 = vmatpush1.msra.mxu0 %v1178
    %1304 = vmatprep.subr.mxu0 %v1183
    %1305 = vmatpush1.msra.mxu0 %v1182
    %1306 = vmatprep.subr.mxu0 %v1187
    %1307 = vmatpush1.msra.mxu0 %v1186
    %1308 = vmatprep.subr.mxu0 %v1191
    %1309 = vmatpush1.msra.mxu0 %v1190
    %1310 = vmatprep.subr.mxu0 %v1195
    %1311 = vmatpush1.msra.mxu0 %v1194
    %1312 = vmatprep.subr.mxu0 %v1199
    %1313 = vmatpush1.msra.mxu0 %v1198
    %1314 = vmatprep.subr.mxu0 %v1203
    %1315 = vmatpush1.msra.mxu0 %v1202
    %1316 = vmatprep.subr.mxu0 0.0
    %1317 = vmatpush1.msra.mxu0 0.0
    %1318 = vmatprep.subr.mxu0 0.0
    %1319 = vmatpush1.msra.mxu0 0.0
    %1320 = vmatprep.subr.mxu0 0.0
    %1321 = vmatpush1.msra.mxu0 0.0
    %1322 = vmatprep.subr.mxu0 0.0
    %1323 = vmatpush1.msra.mxu0 0.0
    %1324 = vmatprep.subr.mxu0 0.0
    %1325 = vmatpush1.msra.mxu0 0.0
    %1326 = vmatprep.subr.mxu0 0.0
    %1327 = vmatpush1.msra.mxu0 0.0
    %1328 = vmatprep.subr.mxu0 0.0
    %1329 = vmatpush1.msra.mxu0 0.0
    %1330 = vmatprep.subr.mxu0 0.0
    %1331 = vmatpush1.msra.mxu0 0.0
    %1332 = vmatprep.subr.mxu0 0.0
    %1333 = vmatpush1.msra.mxu0 0.0
    %1334 = vmatprep.subr.mxu0 0.0
    %1335 = vmatpush1.msra.mxu0 0.0
    %1336 = vmatprep.subr.mxu0 0.0
    %1337 = vmatpush1.msra.mxu0 0.0
    %1338 = vmatprep.subr.mxu0 0.0
    %1339 = vmatpush1.msra.mxu0 0.0
    %1340 = vmatprep.subr.mxu0 0.0
    %1341 = vmatpush1.msra.mxu0 0.0
    %1342 = vmatprep.subr.mxu0 0.0
    %1343 = vmatpush1.msra.mxu0 0.0
    %1344 = vmatprep.subr.mxu0 0.0
    %1345 = vmatpush1.msra.mxu0 0.0
    %1346 = vmatprep.subr.mxu0 0.0
    %1347 = vmatpush1.msra.mxu0 0.0
    %1348 = vmatprep.subr.mxu0 0.0
    %1349 = vmatpush1.msra.mxu0 0.0
    %1350 = vmatprep.subr.mxu0 0.0
    %1351 = vmatpush1.msra.mxu0 0.0
    %1352 = vmatprep.subr.mxu0 0.0
    %1353 = vmatpush1.msra.mxu0 0.0
    %1354 = vmatprep.subr.mxu0 0.0
    %1355 = vmatpush1.msra.mxu0 0.0
    %1356 = vmatprep.subr.mxu0 0.0
    %1357 = vmatpush1.msra.mxu0 0.0
    %1358 = vmatprep.subr.mxu0 0.0
    %1359 = vmatpush1.msra.mxu0 0.0
    %1360 = vmatprep.subr.mxu0 0.0
    %1361 = vmatpush1.msra.mxu0 0.0
    %1362 = vmatprep.subr.mxu0 0.0
    %1363 = vmatpush1.msra.mxu0 0.0
    %1364 = vmatprep.mubr.f32.mxu0 0.0
    %1365 = vmatmul.mubr.f32.gmra.mrb[0].mxu0 %v1227
    %v1366 = vpop.f32.mrb[0].mxu0
    %v1367 = vadd.f32 %v1217, %v1366
    %v1368 = vpop.f32.mrb[0].mxu0
    %v1369 = vadd.f32 %v1221, %v1368
    %1370 = vdwg.mxu0
    %v1371 = vmax.f32 %v1296, 0.0
    %v1372 = vmax.f32 %v1298, 0.0
    %v1373 = vmax.f32 %v1367, 0.0
    %v1374 = vmax.f32 %v1369, 0.0
    %v1375 = vld [vmem:[%s9] sm:$0xff]
    %v1376 = vld [vmem:[%s9 + $0x8] sm:$0xff]
    %v1377 = vld [vmem:[%s9 + $0x10] sm:$0xff]
    %v1378 = vld [vmem:[%s9 + $0x18] sm:$0xff]
    %v1379 = vld [vmem:[%s9 + $0x20] sm:$0xff]
    %v1380 = vld [vmem:[%s9 + $0x28] sm:$0xff]
    %v1381 = vld [vmem:[%s9 + $0x30] sm:$0xff]
    %v1382 = vld [vmem:[%s9 + $0x38] sm:$0xff]
    %v1383 = vld [vmem:[%s9 + $0x40] sm:$0xff]
    %v1384 = vld [vmem:[%s9 + $0x48] sm:$0xff]
    %v1385 = vld [vmem:[%s9 + $0x50] sm:$0xff]
    %v1386 = vld [vmem:[%s9 + $0x58] sm:$0xff]
    %v1387 = vld [vmem:[%s9 + $0x60] sm:$0xff]
    %v1388 = vld [vmem:[%s9 + $0x68] sm:$0xff]
    %v1389 = vld [vmem:[%s9 + $0x70] sm:$0xff]
    %v1390 = vld [vmem:[%s9 + $0x78] sm:$0xff]
    %v1391 = vld [vmem:[%s9 + $0x80] sm:$0xff]
    %v1392 = vld [vmem:[%s9 + $0x88] sm:$0xff]
    %v1393 = vld [vmem:[%s9 + $0x90] sm:$0xff]
    %v1394 = vld [vmem:[%s9 + $0x98] sm:$0xff]
    %v1395 = vld [vmem:[%s9 + $0xa0] sm:$0xff]
    %v1396 = vld [vmem:[%s9 + $0xa8] sm:$0xff]
    %v1397 = vld [vmem:[%s9 + $0xb0] sm:$0xff]
    %v1398 = vld [vmem:[%s9 + $0xb8] sm:$0xff]
    %v1399 = vld [vmem:[%s9 + $0xc0] sm:$0xff]
    %v1400 = vld [vmem:[%s9 + $0xc8] sm:$0xff]
    %v1401 = vld [vmem:[%s9 + $0xd0] sm:$0xff]
    %v1402 = vld [vmem:[%s9 + $0xd8] sm:$0xff]
    %v1403 = vld [vmem:[%s9 + $0xe0] sm:$0xff]
    %v1404 = vld [vmem:[%s9 + $0xe8] sm:$0xff]
    %v1405 = vld [vmem:[%s9 + $0xf0] sm:$0xff]
    %v1406 = vld [vmem:[%s9 + $0xf8] sm:$0xff]
    %v1407 = vld [vmem:[%s9 + $0x100] sm:$0xff]
    %v1408 = vld [vmem:[%s9 + $0x108] sm:$0xff]
    %v1409 = vld [vmem:[%s9 + $0x110] sm:$0xff]
    %v1410 = vld [vmem:[%s9 + $0x118] sm:$0xff]
    %v1411 = vld [vmem:[%s9 + $0x120] sm:$0xff]
    %v1412 = vld [vmem:[%s9 + $0x128] sm:$0xff]
    %v1413 = vld [vmem:[%s9 + $0x130] sm:$0xff]
    %v1414 = vld [vmem:[%s9 + $0x138] sm:$0xff]
    %v1415 = vld [vmem:[%s9 + $0x140] sm:$0xff]
    %v1416 = vld [vmem:[%s9 + $0x148] sm:$0xff]
    %v1417 = vld [vmem:[%s9 + $0x150] sm:$0xff]
    %v1418 = vld [vmem:[%s9 + $0x158] sm:$0xff]
    %v1419 = vld [vmem:[%s9 + $0x160] sm:$0xff]
    %v1420 = vld [vmem:[%s9 + $0x168] sm:$0xff]
    %v1421 = vld [vmem:[%s9 + $0x170] sm:$0xff]
    %v1422 = vld [vmem:[%s9 + $0x178] sm:$0xff]
    %v1423 = vld [vmem:[%s9 + $0x180] sm:$0xff]
    %v1424 = vld [vmem:[%s9 + $0x188] sm:$0xff]
    %v1425 = vld [vmem:[%s9 + $0x190] sm:$0xff]
    %v1426 = vld [vmem:[%s9 + $0x198] sm:$0xff]
    %v1427 = vld [vmem:[%s9 + $0x1a0] sm:$0xff]
    %v1428 = vld [vmem:[%s9 + $0x1a8] sm:$0xff]
    %v1429 = vld [vmem:[%s9 + $0x1b0] sm:$0xff]
    %v1430 = vld [vmem:[%s9 + $0x1b8] sm:$0xff]
    %v1431 = vld [vmem:[%s9 + $0x1c0] sm:$0xff]
    %v1432 = vld [vmem:[%s9 + $0x1c8] sm:$0xff]
    %v1433 = vld [vmem:[%s9 + $0x1d0] sm:$0xff]
    %v1434 = vld [vmem:[%s9 + $0x1d8] sm:$0xff]
    %v1435 = vld [vmem:[%s9 + $0x1e0] sm:$0xff]
    %v1436 = vld [vmem:[%s9 + $0x1e8] sm:$0xff]
    %v1437 = vld [vmem:[%s9 + $0x1f0] sm:$0xff]
    %v1438 = vld [vmem:[%s9 + $0x1f8] sm:$0xff]
    %v1439 = vld [vmem:[%s10] sm:$0x1]
    %v1441 = vlaneseq
    %v1442 = vshrl.u32 %v1441, 7
    %v1443 = vsub.s32 0, %v1442
    %v1444 = vrot.slane %v1439, %v1443
    %1446 = vmatprep.subr.mxu0 0.0
    %1447 = vmatpush1.msra.mxu0 %v1375
    %1448 = vmatprep.subr.mxu0 0.0
    %1449 = vmatpush1.msra.mxu0 %v1376
    %1450 = vmatprep.subr.mxu0 0.0
    %1451 = vmatpush1.msra.mxu0 %v1377
    %1452 = vmatprep.subr.mxu0 0.0
    %1453 = vmatpush1.msra.mxu0 %v1378
    %1454 = vmatprep.subr.mxu0 0.0
    %1455 = vmatpush1.msra.mxu0 %v1379
    %1456 = vmatprep.subr.mxu0 0.0
    %1457 = vmatpush1.msra.mxu0 %v1380
    %1458 = vmatprep.subr.mxu0 0.0
    %1459 = vmatpush1.msra.mxu0 %v1381
    %1460 = vmatprep.subr.mxu0 0.0
    %1461 = vmatpush1.msra.mxu0 %v1382
    %1462 = vmatprep.subr.mxu0 0.0
    %1463 = vmatpush1.msra.mxu0 %v1383
    %1464 = vmatprep.subr.mxu0 0.0
    %1465 = vmatpush1.msra.mxu0 %v1384
    %1466 = vmatprep.subr.mxu0 0.0
    %1467 = vmatpush1.msra.mxu0 %v1385
    %1468 = vmatprep.subr.mxu0 0.0
    %1469 = vmatpush1.msra.mxu0 %v1386
    %1470 = vmatprep.subr.mxu0 0.0
    %1471 = vmatpush1.msra.mxu0 %v1387
    %1472 = vmatprep.subr.mxu0 0.0
    %1473 = vmatpush1.msra.mxu0 %v1388
    %1474 = vmatprep.subr.mxu0 0.0
    %1475 = vmatpush1.msra.mxu0 %v1389
    %1476 = vmatprep.subr.mxu0 0.0
    %1477 = vmatpush1.msra.mxu0 %v1390
    %1478 = vmatprep.subr.mxu0 0.0
    %1479 = vmatpush1.msra.mxu0 %v1391
    %1480 = vmatprep.subr.mxu0 0.0
    %1481 = vmatpush1.msra.mxu0 %v1392
    %1482 = vmatprep.subr.mxu0 0.0
    %1483 = vmatpush1.msra.mxu0 %v1393
    %1484 = vmatprep.subr.mxu0 0.0
    %1485 = vmatpush1.msra.mxu0 %v1394
    %1486 = vmatprep.subr.mxu0 0.0
    %1487 = vmatpush1.msra.mxu0 %v1395
    %1488 = vmatprep.subr.mxu0 0.0
    %1489 = vmatpush1.msra.mxu0 %v1396
    %1490 = vmatprep.subr.mxu0 0.0
    %1491 = vmatpush1.msra.mxu0 %v1397
    %1492 = vmatprep.subr.mxu0 0.0
    %1493 = vmatpush1.msra.mxu0 %v1398
    %1494 = vmatprep.subr.mxu0 0.0
    %1495 = vmatpush1.msra.mxu0 %v1399
    %1496 = vmatprep.subr.mxu0 0.0
    %1497 = vmatpush1.msra.mxu0 %v1400
    %1498 = vmatprep.subr.mxu0 0.0
    %1499 = vmatpush1.msra.mxu0 %v1401
    %1500 = vmatprep.subr.mxu0 0.0
    %1501 = vmatpush1.msra.mxu0 %v1402
    %1502 = vmatprep.subr.mxu0 0.0
    %1503 = vmatpush1.msra.mxu0 %v1403
    %1504 = vmatprep.subr.mxu0 0.0
    %1505 = vmatpush1.msra.mxu0 %v1404
    %1506 = vmatprep.subr.mxu0 0.0
    %1507 = vmatpush1.msra.mxu0 %v1405
    %1508 = vmatprep.subr.mxu0 0.0
    %1509 = vmatpush1.msra.mxu0 %v1406
    %1510 = vmatprep.mubr.f32.mxu0 %v1372
    %1511 = vmatmul.mubr.f32.gmra.mrb[0].mxu0 %v1371
    %v1512 = vpop.f32.mrb[0].mxu0
    %v1513 = vadd.f32 %v1444, %v1512
    %v1514 = vpop.f32.mrb[0].mxu0
    %1515 = vdwg.mxu0
    %1516 = vmatprep.subr.mxu0 0.0
    %1517 = vmatpush1.msra.mxu0 %v1407
    %1518 = vmatprep.subr.mxu0 0.0
    %1519 = vmatpush1.msra.mxu0 %v1408
    %1520 = vmatprep.subr.mxu0 0.0
    %1521 = vmatpush1.msra.mxu0 %v1409
    %1522 = vmatprep.subr.mxu0 0.0
    %1523 = vmatpush1.msra.mxu0 %v1410
    %1524 = vmatprep.subr.mxu0 0.0
    %1525 = vmatpush1.msra.mxu0 %v1411
    %1526 = vmatprep.subr.mxu0 0.0
    %1527 = vmatpush1.msra.mxu0 %v1412
    %1528 = vmatprep.subr.mxu0 0.0
    %1529 = vmatpush1.msra.mxu0 %v1413
    %1530 = vmatprep.subr.mxu0 0.0
    %1531 = vmatpush1.msra.mxu0 %v1414
    %1532 = vmatprep.subr.mxu0 0.0
    %1533 = vmatpush1.msra.mxu0 %v1415
    %1534 = vmatprep.subr.mxu0 0.0
    %1535 = vmatpush1.msra.mxu0 %v1416
    %1536 = vmatprep.subr.mxu0 0.0
    %1537 = vmatpush1.msra.mxu0 %v1417
    %1538 = vmatprep.subr.mxu0 0.0
    %1539 = vmatpush1.msra.mxu0 %v1418
    %1540 = vmatprep.subr.mxu0 0.0
    %1541 = vmatpush1.msra.mxu0 %v1419
    %1542 = vmatprep.subr.mxu0 0.0
    %1543 = vmatpush1.msra.mxu0 %v1420
    %1544 = vmatprep.subr.mxu0 0.0
    %1545 = vmatpush1.msra.mxu0 %v1421
    %1546 = vmatprep.subr.mxu0 0.0
    %1547 = vmatpush1.msra.mxu0 %v1422
    %1548 = vmatprep.subr.mxu0 0.0
    %1549 = vmatpush1.msra.mxu0 %v1423
    %1550 = vmatprep.subr.mxu0 0.0
    %1551 = vmatpush1.msra.mxu0 %v1424
    %1552 = vmatprep.subr.mxu0 0.0
    %1553 = vmatpush1.msra.mxu0 %v1425
    %1554 = vmatprep.subr.mxu0 0.0
    %1555 = vmatpush1.msra.mxu0 %v1426
    %1556 = vmatprep.subr.mxu0 0.0
    %1557 = vmatpush1.msra.mxu0 %v1427
    %1558 = vmatprep.subr.mxu0 0.0
    %1559 = vmatpush1.msra.mxu0 %v1428
    %1560 = vmatprep.subr.mxu0 0.0
    %1561 = vmatpush1.msra.mxu0 %v1429
    %1562 = vmatprep.subr.mxu0 0.0
    %1563 = vmatpush1.msra.mxu0 %v1430
    %1564 = vmatprep.subr.mxu0 0.0
    %1565 = vmatpush1.msra.mxu0 %v1431
    %1566 = vmatprep.subr.mxu0 0.0
    %1567 = vmatpush1.msra.mxu0 %v1432
    %1568 = vmatprep.subr.mxu0 0.0
    %1569 = vmatpush1.msra.mxu0 %v1433
    %1570 = vmatprep.subr.mxu0 0.0
    %1571 = vmatpush1.msra.mxu0 %v1434
    %1572 = vmatprep.subr.mxu0 0.0
    %1573 = vmatpush1.msra.mxu0 %v1435
    %1574 = vmatprep.subr.mxu0 0.0
    %1575 = vmatpush1.msra.mxu0 %v1436
    %1576 = vmatprep.subr.mxu0 0.0
    %1577 = vmatpush1.msra.mxu0 %v1437
    %1578 = vmatprep.subr.mxu0 0.0
    %1579 = vmatpush1.msra.mxu0 %v1438
    %1580 = vmatprep.mubr.f32.mxu0 %v1374
    %1581 = vmatmul.mubr.f32.gmra.mrb[0].mxu0 %v1373
    %v1582 = vpop.f32.mrb[0].mxu0
    %v1583 = vadd.f32 %v1513, %v1582
    %v1584 = vpop.f32.mrb[0].mxu0
    %1585 = vdwg.mxu0
    %1587 = vset.pattern.permute.xlu0 0
    %1588 = vperm.xlu0 %1587, %v1583
    %v1589 = vpop.permute.xlu0 %1588
    %v1591 = vadd.f32 %v1589, %v1583
    %1592 = vrot.lane.b32.xlu0 %v1583, 127
    %v1593 = vpop.permute.xlu0 %1592
    %vm1595 = vcmask 41984
    %v1596 = vsel %vm1595, %v1593, 0.0
    %1597 = vadd.xlane.f32.xlu0 %v1596
    %v1598 = vpop.xlane.xlu0 %1597
    %v1599 = vrot.slane %v1598, 4
    %v1600 = vadd.f32 %v1598, %v1599
    %v1601 = vrot.slane %v1600, 2
    %v1602 = vadd.f32 %v1600, %v1601
    %v1603 = vrot.slane %v1602, 1
    %v1604 = vadd.f32 %v1602, %v1603
    %s1605 = vtos %v1604
    %v1606 = vrcp.pop 12.0
    %s1607 = vtos %v1606
    %s1608 = smul.f32 %s1605, %s1607
    %v1609 = vstv %s1608
    %v1610 = vsub.f32 %v1591, %v1609
    %1612 = vrot.lane.b32.xlu0 %v1610, 127
    %v1613 = vpop.permute.xlu0 %1612
    %1615 = vst.msk [vmem:[#allocation4] sm:$0x3] %vm1595, %v1613
    // Predicated region
    $region46: #{qnetwork_forward.1} parent=1 // pred_check
      _
    $region47: #{qnetwork_forward.1} parent=1 // pred_check_branch
      %1617 = sbr.rel (0) target = $region49
    $region48: #{qnetwork_forward.1} parent=1 // pred_region
      %s1619 = ssub.s32 32, 32
      %1620 = vsyncadd [#allocation5], %s1619
      %s1622 = sshll.u32 [#allocation4], 4
      %s1623 = int_to_ptr.vmem [resolvable:$true] %s1622
      %1625 = dma.vmem_to_hbm [thread:$0]  %s1623, 32, %s11, [#allocation5]
    $region49: #{qnetwork_forward.1} parent=1 // pred_fallthru
      _
    // Predicated region
    $region50: #{qnetwork_forward.1} parent=1 // pred_check
      _
    $region51: #{qnetwork_forward.1} parent=1 // pred_check_branch
      %1627 = sbr.rel (0) target = $region53
    $region52: #{qnetwork_forward.1} parent=1 // pred_region
      %1628 = dma.done [#allocation5], 32
    $region53: #{qnetwork_forward.1} parent=1 // pred_fallthru
      _
    %1629 = vsyncpa [#allocation5], 1

</llo_original>
